<compile_context>
chip_gen: v6e
topology: v6e:2x2x1
jax: 0.10.0
libtpu: 0.0.40
codegen_flags: <defaults>
</compile_context>

<pallas_src>
import functools
import math

import jax
import jax.numpy as jnp
from jax.experimental import pallas as pl
from jax.experimental.pallas import tpu as pltpu

LOG_2PI = math.log(2.0 * math.pi)


def _recip(v):
    """Approximate reciprocal on the EUP (frees the VALU divide slot)."""
    if hasattr(pl, "reciprocal"):
        return pl.reciprocal(v, approx=True)
    return 1.0 / v


def dgd_kernel(x_ref, z0_ref, w1t_ref, w1_ref, b1_ref, w2t_ref, w2_ref, b2_ref,
               mean_ref, inv_var_ref, cm_ref, mk_ref,
               tile_ref, red_ref, bcast_ref, scat_ref,
               out_ref, *, lr, inv_n):
    """One row-tile: decoder forward, ELBO terms, analytic grad, Adam step.

    Packed output layout per row: [ x_recon (O) | z_new (D) | elbo_row (1) ].
    """
    x = x_ref[...]                # (T, O)
    z0 = z0_ref[...]              # (T, D)
    o_dim = x.shape[1]
    d_dim = z0.shape[1]

    # ---------- prior.log_prob(z).sum(dim=1), lane-dense (T, K*D) ----------
    # z tiled K times along lanes via MXU against a constant 0/1 matrix.
    zt = jnp.dot(z0, tile_ref[...], preferred_element_type=jnp.float32)       # (T, KD)
    diff = zt - mean_ref[...]                                                 # (T, KD)
    sd = diff * inv_var_ref[...]                                              # (T, KD)
    # cm = c - max_d(c) per component (constant stabilizer; lp <= c), so e <= 1.
    e = jnp.exp(cm_ref[...] - 0.5 * (diff * sd))                              # (T, KD)
    # per-component sum over features -> MXU contraction; floor guards underflow.
    s = jnp.maximum(
        jnp.dot(e, red_ref[...], preferred_element_type=jnp.float32), 1e-37)  # (T, K)
    log_p_z = jnp.sum(mk_ref[...] + jnp.log(s), axis=1, keepdims=True)        # (T, 1)
    # fused softmax-gradient term, computed now so e/sd die before the backward dots
    inv_s_b = jnp.dot(_recip(s), bcast_ref[...],
                      preferred_element_type=jnp.float32)                     # (T, KD)
    g_prior = jnp.dot(e * sd * inv_s_b, scat_ref[...],
                      preferred_element_type=jnp.float32)                     # (T, D)

    # ---------- decoder forward: x_recon = relu(z W1^T + b1) W2^T + b2 ----------
    a = jnp.dot(z0, w1t_ref[...], preferred_element_type=jnp.float32) + b1_ref[...]
    hid = jnp.maximum(a, 0.0)
    xr = jnp.dot(hid, w2t_ref[...], preferred_element_type=jnp.float32) + b2_ref[...]

    # ---------- gaussian posterior log q(z | x_recon) ----------
    dq = z0 - xr                                                              # (T, D)
    log_q = (-0.5 * jnp.sum(dq * dq, axis=1, keepdims=True)
             - 0.5 * LOG_2PI * d_dim)                                         # (T, 1)

    # ---------- per-row BCE log-likelihood (torch clamps log at -100) ----------
    log_xr = jnp.maximum(jnp.log(xr), -100.0)
    log_1xr = jnp.maximum(jnp.log(1.0 - xr), -100.0)
    ll_row = jnp.sum(x * log_xr + (1.0 - x) * log_1xr, axis=1, keepdims=True)

    # per-row ELBO contribution; total elbo = sum over all rows (done in wrapper)
    elbo_row = ll_row + inv_n * (log_p_z - log_q)

    # ---------- analytic d(elbo)/dz ----------
    g_xr = (x - xr) * _recip(xr * (1.0 - xr)) - inv_n * dq                    # EUP recip
    g_h = jnp.dot(g_xr, w2_ref[...], preferred_element_type=jnp.float32)      # (T, H)
    g_a = jnp.where(a > 0.0, g_h, 0.0)
    g_z_dec = jnp.dot(g_a, w1_ref[...], preferred_element_type=jnp.float32)   # (T, D)
    g = g_z_dec - inv_n * g_prior + inv_n * dq

    # ---------- one Adam step on z (t = 1): z <- z - lr * g / (|g| + eps) ----------
    znew = z0 - lr * g * _recip(jnp.abs(g) + 1e-8)

    # ---------- single packed store ----------
    out_ref[:, :o_dim] = xr
    out_ref[:, o_dim:o_dim + d_dim] = znew
    out_ref[:, o_dim + d_dim:] = elbo_row


def _dgd_pallas(x, z0, params, *, lr=0.05, block_n=512, core_parallel=False):
    """Raw kernel call: returns (x_recon (N,O), z_new (N,D), elbo_rows (N,1))."""
    w1, b1, w2, b2, mean, log_var, mix = params
    n, d = z0.shape
    o = x.shape[1]
    h_dim = w1.shape[0]
    k = mean.shape[0]
    kd = k * d
    assert x.shape[0] == n, "original BCE requires n_rep == 1 (x rows == z rows)"

    # hoisted prior constants, flattened lane-dense to (1, K*D)
    c = -0.5 * log_var - 0.5 * LOG_2PI + jnp.log(mix)        # (K,D); K==D broadcast bug kept
    m_k = jnp.max(c, axis=1, keepdims=True)                  # (K,1) constant stabilizer (lp <= c)
    mean_flat = mean.reshape(1, kd)
    inv_var_flat = jnp.exp(-log_var).reshape(1, kd)
    cm_flat = (c - m_k).reshape(1, kd)
    mk_row = m_k.reshape(1, k)

    # constant 0/1 matrices: tile / per-component reduce / broadcast / per-feature
    # reduce all run on the (otherwise idle) MXU instead of narrow cross-lane ops
    eye_d = jnp.eye(d, dtype=jnp.float32)
    eye_k = jnp.eye(k, dtype=jnp.float32)
    tile_mat = jnp.tile(eye_d, (1, k))        # (D, KD): z0 -> z tiled K times along lanes
    scat_d = tile_mat.T                       # (KD, D): sum over components per feature
    red_k = jnp.repeat(eye_k, d, axis=0)      # (KD, K): sum over features per component
    bcast_k = red_k.T                         # (K, KD): broadcast per-component scalars

    w1t = w1.T                                # (D, H) MXU-friendly
    w2t = w2.T                                # (H, O)

    # Row-tile size: multiple of 8 (sublane); lane-dense scratch is tiny so big
    # tiles fit comfortably inside the VMEM limit on all generations.
    if block_n >= n:
        block_n = n
        grid_n = 1
    else:
        block_n = max(8, (block_n // 8) * 8)
        grid_n = pl.cdiv(n, block_n)

    ow = o + d + 1
    row = lambda i: (i, 0)
    whole = lambda i: (0, 0)
    in_specs = [
        pl.BlockSpec((block_n, o), row),      # x
        pl.BlockSpec((block_n, d), row),      # z0
        pl.BlockSpec((d, h_dim), whole),      # w1.T
        pl.BlockSpec((h_dim, d), whole),      # w1
        pl.BlockSpec((1, h_dim), whole),      # b1
        pl.BlockSpec((h_dim, o), whole),      # w2.T
        pl.BlockSpec((o, h_dim), whole),      # w2
        pl.BlockSpec((1, o), whole),          # b2
        pl.BlockSpec((1, kd), whole),         # mean (flattened)
        pl.BlockSpec((1, kd), whole),         # exp(-log_var) (flattened)
        pl.BlockSpec((1, kd), whole),         # c - max_d(c) (flattened)
        pl.BlockSpec((1, k), whole),          # max_d(c) per component
        pl.BlockSpec((d, kd), whole),         # tile_mat
        pl.BlockSpec((kd, k), whole),         # red_k
        pl.BlockSpec((k, kd), whole),         # bcast_k
        pl.BlockSpec((kd, d), whole),         # scat_d
    ]
    out_specs = pl.BlockSpec((block_n, ow), row)
    out_shape = jax.ShapeDtypeStruct((n, ow), jnp.float32)

    cost = pl.CostEstimate(
        flops=4 * n * (d * h_dim + h_dim * o) + 4 * n * kd * (d + k) + 12 * n * kd,
        transcendentals=n * kd + n * (2 * o + k + d + o),
        bytes_accessed=4 * (n * o + n * d + n * ow
                            + 2 * (d * h_dim + h_dim * o) + h_dim + o
                            + 3 * kd + k + 4 * kd * max(d, k)),
    )

    sem = (pltpu.CORE_PARALLEL,) if core_parallel else ("parallel",)

    packed = pl.pallas_call(
        functools.partial(dgd_kernel, lr=lr, inv_n=1.0 / n),
        grid=(grid_n,),
        in_specs=in_specs,
        out_specs=out_specs,
        out_shape=out_shape,
        compiler_params=pltpu.CompilerParams(
            dimension_semantics=sem,          # rows independent; set core_parallel=True on v7x
            vmem_limit_bytes=48 * 1024 * 1024,
        ),
        cost_estimate=cost,
    )(x, z0, w1t, w1, b1, w2t, w2, b2,
      mean_flat, inv_var_flat, cm_flat, mk_row,
      tile_mat, red_k, bcast_k, scat_d)

    return packed[:, :o], packed[:, o:o + d], packed[:, o + d:]


def dgd_forward(x, z0, params, *, lr=0.05, n_rep=1, block_n=512, core_parallel=False):
    xr, z_new, elbo_rows = _dgd_pallas(x, z0, params, lr=lr, block_n=block_n,
                                       core_parallel=core_parallel)
    n, d = z_new.shape
    o = xr.shape[1]
    batch = n // n_rep
    elbo = jnp.sum(elbo_rows)                 # scalar ELBO (mean over rows folded in-kernel)

    xr3 = xr.reshape(n_rep, batch, o)
    z3 = z_new.reshape(n_rep, batch, d)
    # TODO(synk): `elbo.view(n_rep, B)` in the original only type-checks when
    # n_rep*B == 1; broadcast the scalar and keep the literal `[:, idx, :]` indexing.
    elbo_nb = jnp.broadcast_to(elbo, (n_rep, batch))
    elbo_b = jnp.max(elbo_nb, axis=0)
    idx = jnp.argmax(elbo_nb, axis=0).astype(jnp.int32)
    return xr3[:, idx, :], z3[:, idx, :], elbo_b


def prior_sample(key, n, mean, log_var):
    """Prior.sample: mixture weights are deterministically 1 (size-1 event dim)."""
    k, d = mean.shape
    eps = jax.random.normal(key, (n, k, d), dtype=jnp.float32)
    comp = eps * jnp.exp(0.5 * log_var)[None] + mean[None]
    return jnp.sum(comp, axis=1)                                    # (n, D)


# ----------------------- pure-JAX reference (for checking) -----------------------
def _elbo_ref(z, x, w1, b1, w2, b2, mean, log_var, mix):
    a = z @ w1.T + b1
    h = jnp.maximum(a, 0.0)
    xr = h @ w2.T + b2
    var = jnp.exp(log_var)
    diff = z[:, None, :] - mean[None]
    nlp = -0.5 * diff * diff / var[None] - 0.5 * log_var[None] - 0.5 * LOG_2PI
    lp = nlp + jnp.log(mix).reshape(1, 1, -1)
    log_p_z = jax.scipy.special.logsumexp(lp, axis=2).sum(axis=1)
    dq = z - xr
    log_q = -0.5 * jnp.sum(dq * dq, axis=1) - 0.5 * LOG_2PI * z.shape[1]
    ll = jnp.sum(x * jnp.maximum(jnp.log(xr), -100.0)
                 + (1.0 - x) * jnp.maximum(jnp.log(1.0 - xr), -100.0))
    return ll + log_p_z.mean() - log_q.mean(), xr


if __name__ == "__main__":
    B, n_rep = 16, 1
    D = K = O = 16   # module broadcasting requires input_dim == num_components == output_dim
    H = 32
    lr = 0.05
    block_n = 8      # small row tile so the demo exercises a 2-step grid

    key = jax.random.PRNGKey(0)
    k1, k2, k3, k4, k5, k6 = jax.random.split(key, 6)

    # deterministic synthetic parameters (scaled so decoder output lies in (0,1),
    # keeping binary_cross_entropy well defined, as the original module assumes)
    prior_mean = jax.random.normal(k1, (K, D), dtype=jnp.float32)
    prior_log_var = 0.5 * jax.random.normal(k2, (K, D), dtype=jnp.float32)
    prior_mix = jnp.full((1, K), 1.0 / K, dtype=jnp.float32)
    w1 = 0.05 * jax.random.normal(k3, (H, D), dtype=jnp.float32)
    b1 = jnp.full((1, H), 0.01, dtype=jnp.float32)
    w2 = 0.01 * jax.random.normal(k4, (O, H), dtype=jnp.float32)
    b2 = jnp.full((1, O), 0.5, dtype=jnp.float32)
    params = (w1, b1, w2, b2, prior_mean, prior_log_var, prior_mix)

    x = jax.random.uniform(k5, (B, O), dtype=jnp.float32)     # BCE targets in [0,1]
    z0 = prior_sample(k6, n_rep * B, prior_mean, prior_log_var)

    # raw kernel outputs (before the final reshape / "best sample" glue)
    xr_raw, z1_raw, elbo_rows = _dgd_pallas(x, z0, params, lr=lr, block_n=block_n)
    x_recon, z_sel, elbo_b = dgd_forward(x, z0, params, lr=lr, n_rep=n_rep, block_n=block_n)
    jax.block_until_ready((xr_raw, z1_raw, elbo_rows, x_recon, z_sel, elbo_b))

    # ---- check against a pure-JAX autodiff reference ----
    elbo_ref, xr_ref = _elbo_ref(z0, x, *params)
    g_ref = jax.grad(lambda zz: _elbo_ref(zz, x, *params)[0])(z0)
    z1_ref = z0 - lr * g_ref / (jnp.abs(g_ref) + 1e-8)

    assert bool(jnp.all(jnp.isfinite(xr_raw))) and bool(jnp.all(jnp.isfinite(z1_raw)))
    assert bool(jnp.allclose(xr_raw, xr_ref, rtol=1e-2, atol=1e-2))
    assert bool(jnp.allclose(z1_raw, z1_ref, rtol=1e-2, atol=1e-2))
    assert bool(jnp.allclose(jnp.sum(elbo_rows), elbo_ref, rtol=1e-2, atol=1e-2))
    assert x_recon.shape == (n_rep, B, O) and z_sel.shape == (n_rep, B, D) and elbo_b.shape == (B,)
    assert bool(jnp.allclose(elbo_b, jnp.full((B,), elbo_ref), rtol=1e-2, atol=1e-2))

    print("KERNEL_OK")
</pallas_src>

<mosaic_0001>
module attributes {stable_mosaic.version = 11 : i64} {
  func.func @dgd_kernel(%arg0: i32, %arg1: memref<8x16xf32, #tpu.memory_space<vmem>>, %arg2: memref<8x16xf32, #tpu.memory_space<vmem>>, %arg3: memref<16x32xf32, #tpu.memory_space<vmem>>, %arg4: memref<32x16xf32, #tpu.memory_space<vmem>>, %arg5: memref<1x32xf32, #tpu.memory_space<vmem>>, %arg6: memref<32x16xf32, #tpu.memory_space<vmem>>, %arg7: memref<16x32xf32, #tpu.memory_space<vmem>>, %arg8: memref<1x16xf32, #tpu.memory_space<vmem>>, %arg9: memref<1x256xf32, #tpu.memory_space<vmem>>, %arg10: memref<1x256xf32, #tpu.memory_space<vmem>>, %arg11: memref<1x256xf32, #tpu.memory_space<vmem>>, %arg12: memref<1x16xf32, #tpu.memory_space<vmem>>, %arg13: memref<16x256xf32, #tpu.memory_space<vmem>>, %arg14: memref<256x16xf32, #tpu.memory_space<vmem>>, %arg15: memref<16x256xf32, #tpu.memory_space<vmem>>, %arg16: memref<256x16xf32, #tpu.memory_space<vmem>>, %arg17: memref<8x33xf32, #tpu.memory_space<vmem>>) attributes {dimension_semantics = [#tpu.dimension_semantics<parallel>], iteration_bounds = array<i64: 2>, scalar_prefetch = 0 : i64, scratch_operands = 0 : i64, tpu.core_type = #tpu.core_type<tc>, window_params = [{transform_indices = @transform_0, window_bounds = array<i64: 8, 16>}, {transform_indices = @transform_1, window_bounds = array<i64: 8, 16>}, {pipeline_mode = #tpu.pipeline_mode<synchronous>, transform_indices = @transform_2, window_bounds = array<i64: 16, 32>}, {pipeline_mode = #tpu.pipeline_mode<synchronous>, transform_indices = @transform_3, window_bounds = array<i64: 32, 16>}, {pipeline_mode = #tpu.pipeline_mode<synchronous>, transform_indices = @transform_4, window_bounds = array<i64: 1, 32>}, {pipeline_mode = #tpu.pipeline_mode<synchronous>, transform_indices = @transform_5, window_bounds = array<i64: 32, 16>}, {pipeline_mode = #tpu.pipeline_mode<synchronous>, transform_indices = @transform_6, window_bounds = array<i64: 16, 32>}, {pipeline_mode = #tpu.pipeline_mode<synchronous>, transform_indices = @transform_7, window_bounds = array<i64: 1, 16>}, {pipeline_mode = #tpu.pipeline_mode<synchronous>, transform_indices = @transform_8, window_bounds = array<i64: 1, 256>}, {pipeline_mode = #tpu.pipeline_mode<synchronous>, transform_indices = @transform_9, window_bounds = array<i64: 1, 256>}, {pipeline_mode = #tpu.pipeline_mode<synchronous>, transform_indices = @transform_10, window_bounds = array<i64: 1, 256>}, {pipeline_mode = #tpu.pipeline_mode<synchronous>, transform_indices = @transform_11, window_bounds = array<i64: 1, 16>}, {pipeline_mode = #tpu.pipeline_mode<synchronous>, transform_indices = @transform_12, window_bounds = array<i64: 16, 256>}, {pipeline_mode = #tpu.pipeline_mode<synchronous>, transform_indices = @transform_13, window_bounds = array<i64: 256, 16>}, {pipeline_mode = #tpu.pipeline_mode<synchronous>, transform_indices = @transform_14, window_bounds = array<i64: 16, 256>}, {pipeline_mode = #tpu.pipeline_mode<synchronous>, transform_indices = @transform_15, window_bounds = array<i64: 256, 16>}, {transform_indices = @transform_16, window_bounds = array<i64: 8, 33>}]} {
    %c0 = arith.constant 0 : index
    %c0_0 = arith.constant 0 : index
    %0 = vector.load %arg1[%c0, %c0_0] : memref<8x16xf32, #tpu.memory_space<vmem>>, vector<8x16xf32>
    %c0_1 = arith.constant 0 : index
    %c0_2 = arith.constant 0 : index
    %1 = vector.load %arg2[%c0_1, %c0_2] : memref<8x16xf32, #tpu.memory_space<vmem>>, vector<8x16xf32>
    %c0_3 = arith.constant 0 : index
    %c0_4 = arith.constant 0 : index
    %2 = vector.load %arg13[%c0_3, %c0_4] : memref<16x256xf32, #tpu.memory_space<vmem>>, vector<16x256xf32>
    %cst = arith.constant dense<0.000000e+00> : vector<8x256xf32>
    %3 = tpu.matmul %1, %2, %cst {dimension_numbers = #tpu.dot_dimension_numbers<[1], [0], [0], [1], [0, 0, 1, 1], [], []>} : vector<8x16xf32>, vector<16x256xf32>, vector<8x256xf32> -> vector<8x256xf32>
    %c0_5 = arith.constant 0 : index
    %c0_6 = arith.constant 0 : index
    %4 = vector.load %arg9[%c0_5, %c0_6] : memref<1x256xf32, #tpu.memory_space<vmem>>, vector<1x256xf32>
    %5 = vector.broadcast %4 : vector<1x256xf32> to vector<8x256xf32>
    %6 = arith.subf %3, %5 : vector<8x256xf32>
    %c0_7 = arith.constant 0 : index
    %c0_8 = arith.constant 0 : index
    %7 = vector.load %arg10[%c0_7, %c0_8] : memref<1x256xf32, #tpu.memory_space<vmem>>, vector<1x256xf32>
    %8 = vector.broadcast %7 : vector<1x256xf32> to vector<8x256xf32>
    %9 = arith.mulf %6, %8 : vector<8x256xf32>
    %c0_9 = arith.constant 0 : index
    %c0_10 = arith.constant 0 : index
    %10 = vector.load %arg11[%c0_9, %c0_10] : memref<1x256xf32, #tpu.memory_space<vmem>>, vector<1x256xf32>
    %11 = arith.mulf %6, %9 : vector<8x256xf32>
    %cst_11 = arith.constant 5.000000e-01 : f32
    %12 = vector.broadcast %cst_11 : f32 to vector<8x256xf32>
    %13 = arith.mulf %12, %11 : vector<8x256xf32>
    %14 = vector.broadcast %10 : vector<1x256xf32> to vector<8x256xf32>
    %15 = arith.subf %14, %13 : vector<8x256xf32>
    %16 = math.exp %15 : vector<8x256xf32>
    %c0_12 = arith.constant 0 : index
    %c0_13 = arith.constant 0 : index
    %17 = vector.load %arg14[%c0_12, %c0_13] : memref<256x16xf32, #tpu.memory_space<vmem>>, vector<256x16xf32>
    %cst_14 = arith.constant dense<0.000000e+00> : vector<8x16xf32>
    %18 = tpu.matmul %16, %17, %cst_14 {dimension_numbers = #tpu.dot_dimension_numbers<[1], [0], [0], [1], [0, 0, 1, 1], [], []>} : vector<8x256xf32>, vector<256x16xf32>, vector<8x16xf32> -> vector<8x16xf32>
    %cst_15 = arith.constant 9.99999991E-38 : f32
    %19 = vector.broadcast %cst_15 : f32 to vector<8x16xf32>
    %20 = arith.maximumf %18, %19 : vector<8x16xf32>
    %c0_16 = arith.constant 0 : index
    %c0_17 = arith.constant 0 : index
    %21 = vector.load %arg12[%c0_16, %c0_17] : memref<1x16xf32, #tpu.memory_space<vmem>>, vector<1x16xf32>
    %22 = math.log %20 : vector<8x16xf32>
    %23 = vector.broadcast %21 : vector<1x16xf32> to vector<8x16xf32>
    %24 = arith.addf %23, %22 : vector<8x16xf32>
    %cst_18 = arith.constant dense<0.000000e+00> : vector<8xf32>
    %25 = vector.multi_reduction <add>, %24, %cst_18 [1] : vector<8x16xf32> to vector<8xf32>
    %26 = vector.shape_cast %25 : vector<8xf32> to vector<8x1xf32>
    %27 = tpu.reciprocal %20 {approx = true} : vector<8x16xf32> -> vector<8x16xf32>
    %c0_19 = arith.constant 0 : index
    %c0_20 = arith.constant 0 : index
    %28 = vector.load %arg15[%c0_19, %c0_20] : memref<16x256xf32, #tpu.memory_space<vmem>>, vector<16x256xf32>
    %cst_21 = arith.constant dense<0.000000e+00> : vector<8x256xf32>
    %29 = tpu.matmul %27, %28, %cst_21 {dimension_numbers = #tpu.dot_dimension_numbers<[1], [0], [0], [1], [0, 0, 1, 1], [], []>} : vector<8x16xf32>, vector<16x256xf32>, vector<8x256xf32> -> vector<8x256xf32>
    %30 = arith.mulf %16, %9 : vector<8x256xf32>
    %31 = arith.mulf %30, %29 : vector<8x256xf32>
    %c0_22 = arith.constant 0 : index
    %c0_23 = arith.constant 0 : index
    %32 = vector.load %arg16[%c0_22, %c0_23] : memref<256x16xf32, #tpu.memory_space<vmem>>, vector<256x16xf32>
    %cst_24 = arith.constant dense<0.000000e+00> : vector<8x16xf32>
    %33 = tpu.matmul %31, %32, %cst_24 {dimension_numbers = #tpu.dot_dimension_numbers<[1], [0], [0], [1], [0, 0, 1, 1], [], []>} : vector<8x256xf32>, vector<256x16xf32>, vector<8x16xf32> -> vector<8x16xf32>
    %c0_25 = arith.constant 0 : index
    %c0_26 = arith.constant 0 : index
    %34 = vector.load %arg3[%c0_25, %c0_26] : memref<16x32xf32, #tpu.memory_space<vmem>>, vector<16x32xf32>
    %cst_27 = arith.constant dense<0.000000e+00> : vector<8x32xf32>
    %35 = tpu.matmul %1, %34, %cst_27 {dimension_numbers = #tpu.dot_dimension_numbers<[1], [0], [0], [1], [0, 0, 1, 1], [], []>} : vector<8x16xf32>, vector<16x32xf32>, vector<8x32xf32> -> vector<8x32xf32>
    %c0_28 = arith.constant 0 : index
    %c0_29 = arith.constant 0 : index
    %36 = vector.load %arg5[%c0_28, %c0_29] : memref<1x32xf32, #tpu.memory_space<vmem>>, vector<1x32xf32>
    %37 = vector.broadcast %36 : vector<1x32xf32> to vector<8x32xf32>
    %38 = arith.addf %35, %37 : vector<8x32xf32>
    %cst_30 = arith.constant 0.000000e+00 : f32
    %39 = vector.broadcast %cst_30 : f32 to vector<8x32xf32>
    %40 = arith.maximumf %38, %39 : vector<8x32xf32>
    %c0_31 = arith.constant 0 : index
    %c0_32 = arith.constant 0 : index
    %41 = vector.load %arg6[%c0_31, %c0_32] : memref<32x16xf32, #tpu.memory_space<vmem>>, vector<32x16xf32>
    %cst_33 = arith.constant dense<0.000000e+00> : vector<8x16xf32>
    %42 = tpu.matmul %40, %41, %cst_33 {dimension_numbers = #tpu.dot_dimension_numbers<[1], [0], [0], [1], [0, 0, 1, 1], [], []>} : vector<8x32xf32>, vector<32x16xf32>, vector<8x16xf32> -> vector<8x16xf32>
    %c0_34 = arith.constant 0 : index
    %c0_35 = arith.constant 0 : index
    %43 = vector.load %arg8[%c0_34, %c0_35] : memref<1x16xf32, #tpu.memory_space<vmem>>, vector<1x16xf32>
    %44 = vector.broadcast %43 : vector<1x16xf32> to vector<8x16xf32>
    %45 = arith.addf %42, %44 : vector<8x16xf32>
    %46 = arith.subf %1, %45 : vector<8x16xf32>
    %47 = arith.mulf %46, %46 : vector<8x16xf32>
    %cst_36 = arith.constant dense<0.000000e+00> : vector<8xf32>
    %48 = vector.multi_reduction <add>, %47, %cst_36 [1] : vector<8x16xf32> to vector<8xf32>
    %49 = vector.shape_cast %48 : vector<8xf32> to vector<8x1xf32>
    %cst_37 = arith.constant -5.000000e-01 : f32
    %50 = vector.broadcast %cst_37 : f32 to vector<8x1xf32>
    %51 = arith.mulf %50, %49 : vector<8x1xf32>
    %cst_38 = arith.constant 14.7030163 : f32
    %52 = vector.broadcast %cst_38 : f32 to vector<8x1xf32>
    %53 = arith.subf %51, %52 : vector<8x1xf32>
    %54 = math.log %45 : vector<8x16xf32>
    %cst_39 = arith.constant -1.000000e+02 : f32
    %55 = vector.broadcast %cst_39 : f32 to vector<8x16xf32>
    %56 = arith.maximumf %54, %55 : vector<8x16xf32>
    %cst_40 = arith.constant 1.000000e+00 : f32
    %57 = vector.broadcast %cst_40 : f32 to vector<8x16xf32>
    %58 = arith.subf %57, %45 : vector<8x16xf32>
    %59 = math.log %58 : vector<8x16xf32>
    %cst_41 = arith.constant -1.000000e+02 : f32
    %60 = vector.broadcast %cst_41 : f32 to vector<8x16xf32>
    %61 = arith.maximumf %59, %60 : vector<8x16xf32>
    %62 = arith.mulf %0, %56 : vector<8x16xf32>
    %cst_42 = arith.constant 1.000000e+00 : f32
    %63 = vector.broadcast %cst_42 : f32 to vector<8x16xf32>
    %64 = arith.subf %63, %0 : vector<8x16xf32>
    %65 = arith.mulf %64, %61 : vector<8x16xf32>
    %66 = arith.addf %62, %65 : vector<8x16xf32>
    %cst_43 = arith.constant dense<0.000000e+00> : vector<8xf32>
    %67 = vector.multi_reduction <add>, %66, %cst_43 [1] : vector<8x16xf32> to vector<8xf32>
    %68 = vector.shape_cast %67 : vector<8xf32> to vector<8x1xf32>
    %69 = arith.subf %26, %53 : vector<8x1xf32>
    %cst_44 = arith.constant 6.250000e-02 : f32
    %70 = vector.broadcast %cst_44 : f32 to vector<8x1xf32>
    %71 = arith.mulf %70, %69 : vector<8x1xf32>
    %72 = arith.addf %68, %71 : vector<8x1xf32>
    %73 = arith.subf %0, %45 : vector<8x16xf32>
    %cst_45 = arith.constant 1.000000e+00 : f32
    %74 = vector.broadcast %cst_45 : f32 to vector<8x16xf32>
    %75 = arith.subf %74, %45 : vector<8x16xf32>
    %76 = arith.mulf %45, %75 : vector<8x16xf32>
    %77 = tpu.reciprocal %76 {approx = true} : vector<8x16xf32> -> vector<8x16xf32>
    %78 = arith.mulf %73, %77 : vector<8x16xf32>
    %cst_46 = arith.constant 6.250000e-02 : f32
    %79 = vector.broadcast %cst_46 : f32 to vector<8x16xf32>
    %80 = arith.mulf %79, %46 : vector<8x16xf32>
    %81 = arith.subf %78, %80 : vector<8x16xf32>
    %c0_47 = arith.constant 0 : index
    %c0_48 = arith.constant 0 : index
    %82 = vector.load %arg7[%c0_47, %c0_48] : memref<16x32xf32, #tpu.memory_space<vmem>>, vector<16x32xf32>
    %cst_49 = arith.constant dense<0.000000e+00> : vector<8x32xf32>
    %83 = tpu.matmul %81, %82, %cst_49 {dimension_numbers = #tpu.dot_dimension_numbers<[1], [0], [0], [1], [0, 0, 1, 1], [], []>} : vector<8x16xf32>, vector<16x32xf32>, vector<8x32xf32> -> vector<8x32xf32>
    %cst_50 = arith.constant 0.000000e+00 : f32
    %84 = vector.broadcast %cst_50 : f32 to vector<8x32xf32>
    %85 = arith.cmpf ogt, %38, %84 : vector<8x32xf32>
    %cst_51 = arith.constant 0.000000e+00 : f32
    %86 = vector.broadcast %cst_51 : f32 to vector<8x32xf32>
    %87 = arith.select %85, %83, %86 : vector<8x32xi1>, vector<8x32xf32>
    %c0_52 = arith.constant 0 : index
    %c0_53 = arith.constant 0 : index
    %88 = vector.load %arg4[%c0_52, %c0_53] : memref<32x16xf32, #tpu.memory_space<vmem>>, vector<32x16xf32>
    %cst_54 = arith.constant dense<0.000000e+00> : vector<8x16xf32>
    %89 = tpu.matmul %87, %88, %cst_54 {dimension_numbers = #tpu.dot_dimension_numbers<[1], [0], [0], [1], [0, 0, 1, 1], [], []>} : vector<8x32xf32>, vector<32x16xf32>, vector<8x16xf32> -> vector<8x16xf32>
    %cst_55 = arith.constant 6.250000e-02 : f32
    %90 = vector.broadcast %cst_55 : f32 to vector<8x16xf32>
    %91 = arith.mulf %90, %33 : vector<8x16xf32>
    %92 = arith.subf %89, %91 : vector<8x16xf32>
    %cst_56 = arith.constant 6.250000e-02 : f32
    %93 = vector.broadcast %cst_56 : f32 to vector<8x16xf32>
    %94 = arith.mulf %93, %46 : vector<8x16xf32>
    %95 = arith.addf %92, %94 : vector<8x16xf32>
    %cst_57 = arith.constant 5.000000e-02 : f32
    %96 = vector.broadcast %cst_57 : f32 to vector<8x16xf32>
    %97 = arith.mulf %96, %95 : vector<8x16xf32>
    %98 = math.absf %95 : vector<8x16xf32>
    %cst_58 = arith.constant 9.99999993E-9 : f32
    %99 = vector.broadcast %cst_58 : f32 to vector<8x16xf32>
    %100 = arith.addf %98, %99 : vector<8x16xf32>
    %101 = tpu.reciprocal %100 {approx = true} : vector<8x16xf32> -> vector<8x16xf32>
    %102 = arith.mulf %97, %101 : vector<8x16xf32>
    %103 = arith.subf %1, %102 : vector<8x16xf32>
    %c0_59 = arith.constant 0 : index
    %c0_60 = arith.constant 0 : index
    %104 = vector.load %arg17[%c0_59, %c0_60] : memref<8x33xf32, #tpu.memory_space<vmem>>, vector<8x16xf32>
    tpu.vector_store %arg17[%c0_59, %c0_60], %45 {strides = array<i32>} : memref<8x33xf32, #tpu.memory_space<vmem>>, vector<8x16xf32>,
    %c0_61 = arith.constant 0 : index
    %c16 = arith.constant 16 : index
    %105 = vector.load %arg17[%c0_61, %c16] : memref<8x33xf32, #tpu.memory_space<vmem>>, vector<8x16xf32>
    tpu.vector_store %arg17[%c0_61, %c16], %103 {strides = array<i32>} : memref<8x33xf32, #tpu.memory_space<vmem>>, vector<8x16xf32>,
    %c0_62 = arith.constant 0 : index
    %c32 = arith.constant 32 : index
    %106 = vector.load %arg17[%c0_62, %c32] : memref<8x33xf32, #tpu.memory_space<vmem>>, vector<8x1xf32>
    tpu.vector_store %arg17[%c0_62, %c32], %72 {strides = array<i32>} : memref<8x33xf32, #tpu.memory_space<vmem>>, vector<8x1xf32>,
    return
  }
  func.func @transform_0(%arg0: i32) -> (i32, i32) {
    %c0_i32 = arith.constant 0 : i32
    %c0_i32_0 = arith.constant 0 : i32
    return %arg0, %c0_i32 : i32, i32
  }
  func.func @transform_1(%arg0: i32) -> (i32, i32) {
    %c0_i32 = arith.constant 0 : i32
    %c0_i32_0 = arith.constant 0 : i32
    return %arg0, %c0_i32 : i32, i32
  }
  func.func @transform_2(%arg0: i32) -> (i32, i32) {
    %c0_i32 = arith.constant 0 : i32
    %c0_i32_0 = arith.constant 0 : i32
    %c0_i32_1 = arith.constant 0 : i32
    return %c0_i32, %c0_i32_0 : i32, i32
  }
  func.func @transform_3(%arg0: i32) -> (i32, i32) {
    %c0_i32 = arith.constant 0 : i32
    %c0_i32_0 = arith.constant 0 : i32
    %c0_i32_1 = arith.constant 0 : i32
    return %c0_i32, %c0_i32_0 : i32, i32
  }
  func.func @transform_4(%arg0: i32) -> (i32, i32) {
    %c0_i32 = arith.constant 0 : i32
    %c0_i32_0 = arith.constant 0 : i32
    %c0_i32_1 = arith.constant 0 : i32
    return %c0_i32, %c0_i32_0 : i32, i32
  }
  func.func @transform_5(%arg0: i32) -> (i32, i32) {
    %c0_i32 = arith.constant 0 : i32
    %c0_i32_0 = arith.constant 0 : i32
    %c0_i32_1 = arith.constant 0 : i32
    return %c0_i32, %c0_i32_0 : i32, i32
  }
  func.func @transform_6(%arg0: i32) -> (i32, i32) {
    %c0_i32 = arith.constant 0 : i32
    %c0_i32_0 = arith.constant 0 : i32
    %c0_i32_1 = arith.constant 0 : i32
    return %c0_i32, %c0_i32_0 : i32, i32
  }
  func.func @transform_7(%arg0: i32) -> (i32, i32) {
    %c0_i32 = arith.constant 0 : i32
    %c0_i32_0 = arith.constant 0 : i32
    %c0_i32_1 = arith.constant 0 : i32
    return %c0_i32, %c0_i32_0 : i32, i32
  }
  func.func @transform_8(%arg0: i32) -> (i32, i32) {
    %c0_i32 = arith.constant 0 : i32
    %c0_i32_0 = arith.constant 0 : i32
    %c0_i32_1 = arith.constant 0 : i32
    return %c0_i32, %c0_i32_0 : i32, i32
  }
  func.func @transform_9(%arg0: i32) -> (i32, i32) {
    %c0_i32 = arith.constant 0 : i32
    %c0_i32_0 = arith.constant 0 : i32
    %c0_i32_1 = arith.constant 0 : i32
    return %c0_i32, %c0_i32_0 : i32, i32
  }
  func.func @transform_10(%arg0: i32) -> (i32, i32) {
    %c0_i32 = arith.constant 0 : i32
    %c0_i32_0 = arith.constant 0 : i32
    %c0_i32_1 = arith.constant 0 : i32
    return %c0_i32, %c0_i32_0 : i32, i32
  }
  func.func @transform_11(%arg0: i32) -> (i32, i32) {
    %c0_i32 = arith.constant 0 : i32
    %c0_i32_0 = arith.constant 0 : i32
    %c0_i32_1 = arith.constant 0 : i32
    return %c0_i32, %c0_i32_0 : i32, i32
  }
  func.func @transform_12(%arg0: i32) -> (i32, i32) {
    %c0_i32 = arith.constant 0 : i32
    %c0_i32_0 = arith.constant 0 : i32
    %c0_i32_1 = arith.constant 0 : i32
    return %c0_i32, %c0_i32_0 : i32, i32
  }
  func.func @transform_13(%arg0: i32) -> (i32, i32) {
    %c0_i32 = arith.constant 0 : i32
    %c0_i32_0 = arith.constant 0 : i32
    %c0_i32_1 = arith.constant 0 : i32
    return %c0_i32, %c0_i32_0 : i32, i32
  }
  func.func @transform_14(%arg0: i32) -> (i32, i32) {
    %c0_i32 = arith.constant 0 : i32
    %c0_i32_0 = arith.constant 0 : i32
    %c0_i32_1 = arith.constant 0 : i32
    return %c0_i32, %c0_i32_0 : i32, i32
  }
  func.func @transform_15(%arg0: i32) -> (i32, i32) {
    %c0_i32 = arith.constant 0 : i32
    %c0_i32_0 = arith.constant 0 : i32
    %c0_i32_1 = arith.constant 0 : i32
    return %c0_i32, %c0_i32_0 : i32, i32
  }
  func.func @transform_16(%arg0: i32) -> (i32, i32) {
    %c0_i32 = arith.constant 0 : i32
    %c0_i32_0 = arith.constant 0 : i32
    return %arg0, %c0_i32 : i32, i32
  }
}

</mosaic_0001>

<llo_original>
// kernel: tpu_custom_call.1
$region0: #{tpu_custom_call.1}
  #allocation0 [shape = 'u32[]', space=smem, size = 0x4, offset = 0x4, fixed_abs, tag = 'smem constant byte address 0x4 - core index']
  #allocation1 [shape = 'u32[144,128]{1,0:T(1,128)}', space=vmem, size = 0x12000, scoped, tag = 'internal scratch']
  %s0 = inlined_call_operand.vmem [shape: f32[16,16], index: 0, kind: input, shape index: {}]
  %s1 = inlined_call_operand.vmem [shape: f32[16,16], index: 1, kind: input, shape index: {}]
  %s2 = inlined_call_operand.vmem [shape: f32[16,32], index: 2, kind: input, shape index: {}]
  %s3 = inlined_call_operand.vmem [shape: f32[32,16], index: 3, kind: input, shape index: {}]
  %s4 = inlined_call_operand.vmem [shape: f32[1,32], index: 4, kind: input, shape index: {}]
  %s5 = inlined_call_operand.vmem [shape: f32[32,16], index: 5, kind: input, shape index: {}]
  %s6 = inlined_call_operand.vmem [shape: f32[16,32], index: 6, kind: input, shape index: {}]
  %s7 = inlined_call_operand.vmem [shape: f32[1,16], index: 7, kind: input, shape index: {}]
  %s8 = inlined_call_operand.vmem [shape: f32[1,256], index: 8, kind: input, shape index: {}]
  %s9 = inlined_call_operand.vmem [shape: f32[1,256], index: 9, kind: input, shape index: {}]
  %s10 = inlined_call_operand.vmem [shape: f32[1,256], index: 10, kind: input, shape index: {}]
  %s11 = inlined_call_operand.vmem [shape: f32[1,16], index: 11, kind: input, shape index: {}]
  %s12 = inlined_call_operand.vmem [shape: f32[16,256], index: 12, kind: input, shape index: {}]
  %s13 = inlined_call_operand.vmem [shape: f32[256,16], index: 13, kind: input, shape index: {}]
  %s14 = inlined_call_operand.vmem [shape: f32[16,256], index: 14, kind: input, shape index: {}]
  %s15 = inlined_call_operand.vmem [shape: f32[256,16], index: 15, kind: input, shape index: {}]
  %s16 = inlined_call_operand.hbm [shape: f32[16,33], index: 16, kind: output, shape index: {}]
  %s17 = sld [smem:[#allocation0]]
  $region97: #{tpu_custom_call.1} parent=0
    _
  %s19 = ssub.s32 1, %s17
  %s20 = scalar_select 0, %s19, %s17
  $region1: #{tpu_custom_call.1} parent=0
    #allocation2 [shape = 'u8[8192]{0}', space=vmem, size = 0x2000, scoped, tag = 'output window, operand 0']
    #allocation3 [shape = 's32[2]{0}', space=sflag, size = 0x8, scoped, tag = 'scoped memory for tpu_custom_call.1']
    %21 = vsyncpa [#allocation3], 0
    %s22 = scalar_lea.sflag [#allocation3], 1
    %23 = vsyncpa %s22, 0
    loop: start=0, step=1, limit=4
    $region2: #{tpu_custom_call.1} parent=1 // loop_pre_header
      _
    $region3: #{tpu_custom_call.1} parent=1 // loop_header
      %s25 = sphi 0, %s29
      %p26 = scmp.ge.s32.totalorder %s25, 4
      %s35 = sphi 0, %s37
      %s38 = sphi 0, %s35
      %s39 = sphi 0, %s38
      %s55 = sphi 0, %s39
      %s61 = sphi 0, %s63
      %s64 = sphi 0, %s61
      %s65 = sphi 0, %s64
      %s81 = sphi 0, %s65
      %s85 = sphi 0, %s85
      %s87 = sphi 0, %s85
      %s88 = sphi 0, %s87
      %s102 = sphi 0, %s88
      %s106 = sphi 0, %s106
      %s108 = sphi 0, %s106
      %s109 = sphi 0, %s108
      %s123 = sphi 0, %s109
      %s127 = sphi 0, %s127
      %s129 = sphi 0, %s127
      %s130 = sphi 0, %s129
      %s144 = sphi 0, %s130
      %s148 = sphi 0, %s148
      %s150 = sphi 0, %s148
      %s151 = sphi 0, %s150
      %s165 = sphi 0, %s151
      %s169 = sphi 0, %s169
      %s171 = sphi 0, %s169
      %s172 = sphi 0, %s171
      %s186 = sphi 0, %s172
      %s190 = sphi 0, %s190
      %s192 = sphi 0, %s190
      %s193 = sphi 0, %s192
      %s207 = sphi 0, %s193
      %s211 = sphi 0, %s211
      %s213 = sphi 0, %s211
      %s214 = sphi 0, %s213
      %s228 = sphi 0, %s214
      %s232 = sphi 0, %s232
      %s234 = sphi 0, %s232
      %s235 = sphi 0, %s234
      %s249 = sphi 0, %s235
      %s253 = sphi 0, %s253
      %s255 = sphi 0, %s253
      %s256 = sphi 0, %s255
      %s270 = sphi 0, %s256
      %s274 = sphi 0, %s274
      %s276 = sphi 0, %s274
      %s277 = sphi 0, %s276
      %s291 = sphi 0, %s277
      %s295 = sphi 0, %s295
      %s297 = sphi 0, %s295
      %s298 = sphi 0, %s297
      %s312 = sphi 0, %s298
      %s316 = sphi 0, %s316
      %s318 = sphi 0, %s316
      %s319 = sphi 0, %s318
      %s333 = sphi 0, %s319
      %s337 = sphi 0, %s337
      %s339 = sphi 0, %s337
      %s340 = sphi 0, %s339
      %s354 = sphi 0, %s340
      %s358 = sphi 0, %s358
      %s360 = sphi 0, %s358
      %s361 = sphi 0, %s360
      %s375 = sphi 0, %s361
      %s381 = sphi 0, %s383
      %s384 = sphi 0, %s381
      %s385 = sphi 0, %s384
      %s401 = sphi 0, %s385
    $region4: #{tpu_custom_call.1} parent=1 // loop_header_branch
      %28 = sbr.rel (%p26) target = $region8
    $region5: #{tpu_custom_call.1} parent=1 // loop_body
      %s30 = ssub.s32 %s25, 1
      %s31 = ssub.s32 %s25, 2
      %s32 = sadd.s32 %s25, 1
      %s33 = ssub.s32 %s25, %s32
      %p34 = scmp.eq.s32.totalorder %s33, 0
      %s36 = sadd.s32 %s35, 1
      %s37 = scalar_select %p34, %s35, %s36
      %p40 = pneg %p34
      %p41 = scmp.eq.s32.totalorder %s25, 1
      %p42 = por %p40, %p41
      %p43 = scmp.ne.s32.totalorder %s35, %s38
      %p44 = scmp.eq.s32.totalorder %s25, 0
      %p45 = por %p43, %p44
      %p46 = scmp.ne.s32.totalorder %s35, %s38
      %p47 = scmp.eq.s32.totalorder %s30, 1
      %p48 = por %p46, %p47
      %p49 = scmp.ne.s32.totalorder %s38, %s39
      %p50 = scmp.eq.s32.totalorder %s30, 0
      %p51 = por %p49, %p50
      %p52 = scmp.ne.s32.totalorder %s38, %s39
      %p53 = scmp.eq.s32.totalorder %s31, 1
      %p54 = por %p52, %p53
      %p56 = scmp.ne.s32.totalorder %s39, %s55
      %p57 = scmp.eq.s32.totalorder %s31, 0
      %p58 = por %p56, %p57
      %s59 = ssub.s32 %s25, %s32
      %p60 = scmp.eq.s32.totalorder %s59, 0
      %s62 = sadd.s32 %s61, 1
      %s63 = scalar_select %p60, %s61, %s62
      %p66 = pneg %p60
      %p67 = scmp.eq.s32.totalorder %s25, 1
      %p68 = por %p66, %p67
      %p69 = scmp.ne.s32.totalorder %s61, %s64
      %p70 = scmp.eq.s32.totalorder %s25, 0
      %p71 = por %p69, %p70
      %p72 = scmp.ne.s32.totalorder %s61, %s64
      %p73 = scmp.eq.s32.totalorder %s30, 1
      %p74 = por %p72, %p73
      %p75 = scmp.ne.s32.totalorder %s64, %s65
      %p76 = scmp.eq.s32.totalorder %s30, 0
      %p77 = por %p75, %p76
      %p78 = scmp.ne.s32.totalorder %s64, %s65
      %p79 = scmp.eq.s32.totalorder %s31, 1
      %p80 = por %p78, %p79
      %p82 = scmp.ne.s32.totalorder %s65, %s81
      %p83 = scmp.eq.s32.totalorder %s31, 0
      %p84 = por %p82, %p83
      %s86 = sadd.s32 %s85, 1
      %p89 = scmp.eq.s32.totalorder %s25, 1
      %p90 = scmp.ne.s32.totalorder %s85, %s87
      %p91 = scmp.eq.s32.totalorder %s25, 0
      %p92 = por %p90, %p91
      %p93 = scmp.ne.s32.totalorder %s85, %s87
      %p94 = scmp.eq.s32.totalorder %s30, 1
      %p95 = por %p93, %p94
      %p96 = scmp.ne.s32.totalorder %s87, %s88
      %p97 = scmp.eq.s32.totalorder %s30, 0
      %p98 = por %p96, %p97
      %p99 = scmp.ne.s32.totalorder %s87, %s88
      %p100 = scmp.eq.s32.totalorder %s31, 1
      %p101 = por %p99, %p100
      %p103 = scmp.ne.s32.totalorder %s88, %s102
      %p104 = scmp.eq.s32.totalorder %s31, 0
      %p105 = por %p103, %p104
      %s107 = sadd.s32 %s106, 1
      %p110 = scmp.eq.s32.totalorder %s25, 1
      %p111 = scmp.ne.s32.totalorder %s106, %s108
      %p112 = scmp.eq.s32.totalorder %s25, 0
      %p113 = por %p111, %p112
      %p114 = scmp.ne.s32.totalorder %s106, %s108
      %p115 = scmp.eq.s32.totalorder %s30, 1
      %p116 = por %p114, %p115
      %p117 = scmp.ne.s32.totalorder %s108, %s109
      %p118 = scmp.eq.s32.totalorder %s30, 0
      %p119 = por %p117, %p118
      %p120 = scmp.ne.s32.totalorder %s108, %s109
      %p121 = scmp.eq.s32.totalorder %s31, 1
      %p122 = por %p120, %p121
      %p124 = scmp.ne.s32.totalorder %s109, %s123
      %p125 = scmp.eq.s32.totalorder %s31, 0
      %p126 = por %p124, %p125
      %s128 = sadd.s32 %s127, 1
      %p131 = scmp.eq.s32.totalorder %s25, 1
      %p132 = scmp.ne.s32.totalorder %s127, %s129
      %p133 = scmp.eq.s32.totalorder %s25, 0
      %p134 = por %p132, %p133
      %p135 = scmp.ne.s32.totalorder %s127, %s129
      %p136 = scmp.eq.s32.totalorder %s30, 1
      %p137 = por %p135, %p136
      %p138 = scmp.ne.s32.totalorder %s129, %s130
      %p139 = scmp.eq.s32.totalorder %s30, 0
      %p140 = por %p138, %p139
      %p141 = scmp.ne.s32.totalorder %s129, %s130
      %p142 = scmp.eq.s32.totalorder %s31, 1
      %p143 = por %p141, %p142
      %p145 = scmp.ne.s32.totalorder %s130, %s144
      %p146 = scmp.eq.s32.totalorder %s31, 0
      %p147 = por %p145, %p146
      %s149 = sadd.s32 %s148, 1
      %p152 = scmp.eq.s32.totalorder %s25, 1
      %p153 = scmp.ne.s32.totalorder %s148, %s150
      %p154 = scmp.eq.s32.totalorder %s25, 0
      %p155 = por %p153, %p154
      %p156 = scmp.ne.s32.totalorder %s148, %s150
      %p157 = scmp.eq.s32.totalorder %s30, 1
      %p158 = por %p156, %p157
      %p159 = scmp.ne.s32.totalorder %s150, %s151
      %p160 = scmp.eq.s32.totalorder %s30, 0
      %p161 = por %p159, %p160
      %p162 = scmp.ne.s32.totalorder %s150, %s151
      %p163 = scmp.eq.s32.totalorder %s31, 1
      %p164 = por %p162, %p163
      %p166 = scmp.ne.s32.totalorder %s151, %s165
      %p167 = scmp.eq.s32.totalorder %s31, 0
      %p168 = por %p166, %p167
      %s170 = sadd.s32 %s169, 1
      %p173 = scmp.eq.s32.totalorder %s25, 1
      %p174 = scmp.ne.s32.totalorder %s169, %s171
      %p175 = scmp.eq.s32.totalorder %s25, 0
      %p176 = por %p174, %p175
      %p177 = scmp.ne.s32.totalorder %s169, %s171
      %p178 = scmp.eq.s32.totalorder %s30, 1
      %p179 = por %p177, %p178
      %p180 = scmp.ne.s32.totalorder %s171, %s172
      %p181 = scmp.eq.s32.totalorder %s30, 0
      %p182 = por %p180, %p181
      %p183 = scmp.ne.s32.totalorder %s171, %s172
      %p184 = scmp.eq.s32.totalorder %s31, 1
      %p185 = por %p183, %p184
      %p187 = scmp.ne.s32.totalorder %s172, %s186
      %p188 = scmp.eq.s32.totalorder %s31, 0
      %p189 = por %p187, %p188
      %s191 = sadd.s32 %s190, 1
      %p194 = scmp.eq.s32.totalorder %s25, 1
      %p195 = scmp.ne.s32.totalorder %s190, %s192
      %p196 = scmp.eq.s32.totalorder %s25, 0
      %p197 = por %p195, %p196
      %p198 = scmp.ne.s32.totalorder %s190, %s192
      %p199 = scmp.eq.s32.totalorder %s30, 1
      %p200 = por %p198, %p199
      %p201 = scmp.ne.s32.totalorder %s192, %s193
      %p202 = scmp.eq.s32.totalorder %s30, 0
      %p203 = por %p201, %p202
      %p204 = scmp.ne.s32.totalorder %s192, %s193
      %p205 = scmp.eq.s32.totalorder %s31, 1
      %p206 = por %p204, %p205
      %p208 = scmp.ne.s32.totalorder %s193, %s207
      %p209 = scmp.eq.s32.totalorder %s31, 0
      %p210 = por %p208, %p209
      %s212 = sadd.s32 %s211, 1
      %p215 = scmp.eq.s32.totalorder %s25, 1
      %p216 = scmp.ne.s32.totalorder %s211, %s213
      %p217 = scmp.eq.s32.totalorder %s25, 0
      %p218 = por %p216, %p217
      %p219 = scmp.ne.s32.totalorder %s211, %s213
      %p220 = scmp.eq.s32.totalorder %s30, 1
      %p221 = por %p219, %p220
      %p222 = scmp.ne.s32.totalorder %s213, %s214
      %p223 = scmp.eq.s32.totalorder %s30, 0
      %p224 = por %p222, %p223
      %p225 = scmp.ne.s32.totalorder %s213, %s214
      %p226 = scmp.eq.s32.totalorder %s31, 1
      %p227 = por %p225, %p226
      %p229 = scmp.ne.s32.totalorder %s214, %s228
      %p230 = scmp.eq.s32.totalorder %s31, 0
      %p231 = por %p229, %p230
      %s233 = sadd.s32 %s232, 1
      %p236 = scmp.eq.s32.totalorder %s25, 1
      %p237 = scmp.ne.s32.totalorder %s232, %s234
      %p238 = scmp.eq.s32.totalorder %s25, 0
      %p239 = por %p237, %p238
      %p240 = scmp.ne.s32.totalorder %s232, %s234
      %p241 = scmp.eq.s32.totalorder %s30, 1
      %p242 = por %p240, %p241
      %p243 = scmp.ne.s32.totalorder %s234, %s235
      %p244 = scmp.eq.s32.totalorder %s30, 0
      %p245 = por %p243, %p244
      %p246 = scmp.ne.s32.totalorder %s234, %s235
      %p247 = scmp.eq.s32.totalorder %s31, 1
      %p248 = por %p246, %p247
      %p250 = scmp.ne.s32.totalorder %s235, %s249
      %p251 = scmp.eq.s32.totalorder %s31, 0
      %p252 = por %p250, %p251
      %s254 = sadd.s32 %s253, 1
      %p257 = scmp.eq.s32.totalorder %s25, 1
      %p258 = scmp.ne.s32.totalorder %s253, %s255
      %p259 = scmp.eq.s32.totalorder %s25, 0
      %p260 = por %p258, %p259
      %p261 = scmp.ne.s32.totalorder %s253, %s255
      %p262 = scmp.eq.s32.totalorder %s30, 1
      %p263 = por %p261, %p262
      %p264 = scmp.ne.s32.totalorder %s255, %s256
      %p265 = scmp.eq.s32.totalorder %s30, 0
      %p266 = por %p264, %p265
      %p267 = scmp.ne.s32.totalorder %s255, %s256
      %p268 = scmp.eq.s32.totalorder %s31, 1
      %p269 = por %p267, %p268
      %p271 = scmp.ne.s32.totalorder %s256, %s270
      %p272 = scmp.eq.s32.totalorder %s31, 0
      %p273 = por %p271, %p272
      %s275 = sadd.s32 %s274, 1
      %p278 = scmp.eq.s32.totalorder %s25, 1
      %p279 = scmp.ne.s32.totalorder %s274, %s276
      %p280 = scmp.eq.s32.totalorder %s25, 0
      %p281 = por %p279, %p280
      %p282 = scmp.ne.s32.totalorder %s274, %s276
      %p283 = scmp.eq.s32.totalorder %s30, 1
      %p284 = por %p282, %p283
      %p285 = scmp.ne.s32.totalorder %s276, %s277
      %p286 = scmp.eq.s32.totalorder %s30, 0
      %p287 = por %p285, %p286
      %p288 = scmp.ne.s32.totalorder %s276, %s277
      %p289 = scmp.eq.s32.totalorder %s31, 1
      %p290 = por %p288, %p289
      %p292 = scmp.ne.s32.totalorder %s277, %s291
      %p293 = scmp.eq.s32.totalorder %s31, 0
      %p294 = por %p292, %p293
      %s296 = sadd.s32 %s295, 1
      %p299 = scmp.eq.s32.totalorder %s25, 1
      %p300 = scmp.ne.s32.totalorder %s295, %s297
      %p301 = scmp.eq.s32.totalorder %s25, 0
      %p302 = por %p300, %p301
      %p303 = scmp.ne.s32.totalorder %s295, %s297
      %p304 = scmp.eq.s32.totalorder %s30, 1
      %p305 = por %p303, %p304
      %p306 = scmp.ne.s32.totalorder %s297, %s298
      %p307 = scmp.eq.s32.totalorder %s30, 0
      %p308 = por %p306, %p307
      %p309 = scmp.ne.s32.totalorder %s297, %s298
      %p310 = scmp.eq.s32.totalorder %s31, 1
      %p311 = por %p309, %p310
      %p313 = scmp.ne.s32.totalorder %s298, %s312
      %p314 = scmp.eq.s32.totalorder %s31, 0
      %p315 = por %p313, %p314
      %s317 = sadd.s32 %s316, 1
      %p320 = scmp.eq.s32.totalorder %s25, 1
      %p321 = scmp.ne.s32.totalorder %s316, %s318
      %p322 = scmp.eq.s32.totalorder %s25, 0
      %p323 = por %p321, %p322
      %p324 = scmp.ne.s32.totalorder %s316, %s318
      %p325 = scmp.eq.s32.totalorder %s30, 1
      %p326 = por %p324, %p325
      %p327 = scmp.ne.s32.totalorder %s318, %s319
      %p328 = scmp.eq.s32.totalorder %s30, 0
      %p329 = por %p327, %p328
      %p330 = scmp.ne.s32.totalorder %s318, %s319
      %p331 = scmp.eq.s32.totalorder %s31, 1
      %p332 = por %p330, %p331
      %p334 = scmp.ne.s32.totalorder %s319, %s333
      %p335 = scmp.eq.s32.totalorder %s31, 0
      %p336 = por %p334, %p335
      %s338 = sadd.s32 %s337, 1
      %p341 = scmp.eq.s32.totalorder %s25, 1
      %p342 = scmp.ne.s32.totalorder %s337, %s339
      %p343 = scmp.eq.s32.totalorder %s25, 0
      %p344 = por %p342, %p343
      %p345 = scmp.ne.s32.totalorder %s337, %s339
      %p346 = scmp.eq.s32.totalorder %s30, 1
      %p347 = por %p345, %p346
      %p348 = scmp.ne.s32.totalorder %s339, %s340
      %p349 = scmp.eq.s32.totalorder %s30, 0
      %p350 = por %p348, %p349
      %p351 = scmp.ne.s32.totalorder %s339, %s340
      %p352 = scmp.eq.s32.totalorder %s31, 1
      %p353 = por %p351, %p352
      %p355 = scmp.ne.s32.totalorder %s340, %s354
      %p356 = scmp.eq.s32.totalorder %s31, 0
      %p357 = por %p355, %p356
      %s359 = sadd.s32 %s358, 1
      %p362 = scmp.eq.s32.totalorder %s25, 1
      %p363 = scmp.ne.s32.totalorder %s358, %s360
      %p364 = scmp.eq.s32.totalorder %s25, 0
      %p365 = por %p363, %p364
      %p366 = scmp.ne.s32.totalorder %s358, %s360
      %p367 = scmp.eq.s32.totalorder %s30, 1
      %p368 = por %p366, %p367
      %p369 = scmp.ne.s32.totalorder %s360, %s361
      %p370 = scmp.eq.s32.totalorder %s30, 0
      %p371 = por %p369, %p370
      %p372 = scmp.ne.s32.totalorder %s360, %s361
      %p373 = scmp.eq.s32.totalorder %s31, 1
      %p374 = por %p372, %p373
      %p376 = scmp.ne.s32.totalorder %s361, %s375
      %p377 = scmp.eq.s32.totalorder %s31, 0
      %p378 = por %p376, %p377
      %s379 = ssub.s32 %s25, %s32
      %p380 = scmp.eq.s32.totalorder %s379, 0
      %s382 = sadd.s32 %s381, 1
      %s383 = scalar_select %p380, %s381, %s382
      %p386 = pneg %p380
      %p387 = scmp.eq.s32.totalorder %s25, 1
      %p388 = por %p386, %p387
      %p389 = scmp.ne.s32.totalorder %s381, %s384
      %p390 = scmp.eq.s32.totalorder %s25, 0
      %p391 = por %p389, %p390
      %p392 = scmp.ne.s32.totalorder %s381, %s384
      %p393 = scmp.eq.s32.totalorder %s30, 1
      %p394 = por %p392, %p393
      %p395 = scmp.ne.s32.totalorder %s384, %s385
      %p396 = scmp.eq.s32.totalorder %s30, 0
      %p397 = por %p395, %p396
      %p398 = scmp.ne.s32.totalorder %s384, %s385
      %p399 = scmp.eq.s32.totalorder %s31, 1
      %p400 = por %p398, %p399
      %p402 = scmp.ne.s32.totalorder %s385, %s401
      %p403 = scmp.eq.s32.totalorder %s31, 0
      %p404 = por %p402, %p403
      %p405 = scmp.le.s32.totalorder 1, %s25
      %p406 = scmp.lt.s32.totalorder %s25, 3
      %p407 = pnand %p405, %p406
      %p408 = pneg %p407
      // Predicated region
      $region9: #{tpu_custom_call.1} parent=5 // pred_check
        _
      $region10: #{tpu_custom_call.1} parent=5 // pred_check_branch
        %410 = sbr.rel (%p407) target = $region12
      $region11: #{tpu_custom_call.1} parent=5 // pred_region
        %s411 = ssub.s32 %s25, 1
        // Predicated region
        $region13: #{tpu_custom_call.1} parent=11 // pred_check
          %p412 = pneg %p98
        $region14: #{tpu_custom_call.1} parent=11 // pred_check_branch
          %414 = sbr.rel (%p412) target = $region16
        $region15: #{tpu_custom_call.1} parent=11 // pred_region
          _
        $region16: #{tpu_custom_call.1} parent=11 // pred_fallthru
          _
        // Predicated region
        $region17: #{tpu_custom_call.1} parent=11 // pred_check
          %p415 = pneg %p119
        $region18: #{tpu_custom_call.1} parent=11 // pred_check_branch
          %417 = sbr.rel (%p415) target = $region20
        $region19: #{tpu_custom_call.1} parent=11 // pred_region
          _
        $region20: #{tpu_custom_call.1} parent=11 // pred_fallthru
          _
        // Predicated region
        $region21: #{tpu_custom_call.1} parent=11 // pred_check
          %p418 = pneg %p140
        $region22: #{tpu_custom_call.1} parent=11 // pred_check_branch
          %420 = sbr.rel (%p418) target = $region24
        $region23: #{tpu_custom_call.1} parent=11 // pred_region
          _
        $region24: #{tpu_custom_call.1} parent=11 // pred_fallthru
          _
        // Predicated region
        $region25: #{tpu_custom_call.1} parent=11 // pred_check
          %p421 = pneg %p161
        $region26: #{tpu_custom_call.1} parent=11 // pred_check_branch
          %423 = sbr.rel (%p421) target = $region28
        $region27: #{tpu_custom_call.1} parent=11 // pred_region
          _
        $region28: #{tpu_custom_call.1} parent=11 // pred_fallthru
          _
        // Predicated region
        $region29: #{tpu_custom_call.1} parent=11 // pred_check
          %p424 = pneg %p182
        $region30: #{tpu_custom_call.1} parent=11 // pred_check_branch
          %426 = sbr.rel (%p424) target = $region32
        $region31: #{tpu_custom_call.1} parent=11 // pred_region
          _
        $region32: #{tpu_custom_call.1} parent=11 // pred_fallthru
          _
        // Predicated region
        $region33: #{tpu_custom_call.1} parent=11 // pred_check
          %p427 = pneg %p203
        $region34: #{tpu_custom_call.1} parent=11 // pred_check_branch
          %429 = sbr.rel (%p427) target = $region36
        $region35: #{tpu_custom_call.1} parent=11 // pred_region
          _
        $region36: #{tpu_custom_call.1} parent=11 // pred_fallthru
          _
        // Predicated region
        $region37: #{tpu_custom_call.1} parent=11 // pred_check
          %p430 = pneg %p224
        $region38: #{tpu_custom_call.1} parent=11 // pred_check_branch
          %432 = sbr.rel (%p430) target = $region40
        $region39: #{tpu_custom_call.1} parent=11 // pred_region
          _
        $region40: #{tpu_custom_call.1} parent=11 // pred_fallthru
          _
        // Predicated region
        $region41: #{tpu_custom_call.1} parent=11 // pred_check
          %p433 = pneg %p245
        $region42: #{tpu_custom_call.1} parent=11 // pred_check_branch
          %435 = sbr.rel (%p433) target = $region44
        $region43: #{tpu_custom_call.1} parent=11 // pred_region
          _
        $region44: #{tpu_custom_call.1} parent=11 // pred_fallthru
          _
        // Predicated region
        $region45: #{tpu_custom_call.1} parent=11 // pred_check
          %p436 = pneg %p266
        $region46: #{tpu_custom_call.1} parent=11 // pred_check_branch
          %438 = sbr.rel (%p436) target = $region48
        $region47: #{tpu_custom_call.1} parent=11 // pred_region
          _
        $region48: #{tpu_custom_call.1} parent=11 // pred_fallthru
          _
        // Predicated region
        $region49: #{tpu_custom_call.1} parent=11 // pred_check
          %p439 = pneg %p287
        $region50: #{tpu_custom_call.1} parent=11 // pred_check_branch
          %441 = sbr.rel (%p439) target = $region52
        $region51: #{tpu_custom_call.1} parent=11 // pred_region
          _
        $region52: #{tpu_custom_call.1} parent=11 // pred_fallthru
          _
        // Predicated region
        $region53: #{tpu_custom_call.1} parent=11 // pred_check
          %p442 = pneg %p308
        $region54: #{tpu_custom_call.1} parent=11 // pred_check_branch
          %444 = sbr.rel (%p442) target = $region56
        $region55: #{tpu_custom_call.1} parent=11 // pred_region
          _
        $region56: #{tpu_custom_call.1} parent=11 // pred_fallthru
          _
        // Predicated region
        $region57: #{tpu_custom_call.1} parent=11 // pred_check
          %p445 = pneg %p329
        $region58: #{tpu_custom_call.1} parent=11 // pred_check_branch
          %447 = sbr.rel (%p445) target = $region60
        $region59: #{tpu_custom_call.1} parent=11 // pred_region
          _
        $region60: #{tpu_custom_call.1} parent=11 // pred_fallthru
          _
        // Predicated region
        $region61: #{tpu_custom_call.1} parent=11 // pred_check
          %p448 = pneg %p350
        $region62: #{tpu_custom_call.1} parent=11 // pred_check_branch
          %450 = sbr.rel (%p448) target = $region64
        $region63: #{tpu_custom_call.1} parent=11 // pred_region
          _
        $region64: #{tpu_custom_call.1} parent=11 // pred_fallthru
          _
        // Predicated region
        $region65: #{tpu_custom_call.1} parent=11 // pred_check
          %p451 = pneg %p371
        $region66: #{tpu_custom_call.1} parent=11 // pred_check_branch
          %453 = sbr.rel (%p451) target = $region68
        $region67: #{tpu_custom_call.1} parent=11 // pred_region
          _
        $region68: #{tpu_custom_call.1} parent=11 // pred_fallthru
          _
      $region12: #{tpu_custom_call.1} parent=5 // pred_fallthru
        _
      %p454 = scmp.lt.s32.totalorder %s25, 2
      // Predicated region
      $region69: #{tpu_custom_call.1} parent=5 // pred_check
        %p455 = pneg %p454
      $region70: #{tpu_custom_call.1} parent=5 // pred_check_branch
        %457 = sbr.rel (%p455) target = $region72
      $region71: #{tpu_custom_call.1} parent=5 // pred_region
        // Predicated region
        $region73: #{tpu_custom_call.1} parent=71 // pred_check
          %p458 = pneg %p45
        $region74: #{tpu_custom_call.1} parent=71 // pred_check_branch
          %460 = sbr.rel (%p458) target = $region76
        $region75: #{tpu_custom_call.1} parent=71 // pred_region
          %p461 = scmp.lt.s32.totalorder %s25, 1
          %s462 = scalar_select %p461, %s25, 1
          %s463 = smul.addr %s462, 8
          %s464 = scalar_lea.vmem %s0, %s463
        $region76: #{tpu_custom_call.1} parent=71 // pred_fallthru
          _
        // Predicated region
        $region77: #{tpu_custom_call.1} parent=71 // pred_check
          %p465 = pneg %p71
        $region78: #{tpu_custom_call.1} parent=71 // pred_check_branch
          %467 = sbr.rel (%p465) target = $region80
        $region79: #{tpu_custom_call.1} parent=71 // pred_region
          %p468 = scmp.lt.s32.totalorder %s25, 1
          %s469 = scalar_select %p468, %s25, 1
          %s470 = smul.addr %s469, 8
          %s471 = scalar_lea.vmem %s1, %s470
        $region80: #{tpu_custom_call.1} parent=71 // pred_fallthru
          _
      $region72: #{tpu_custom_call.1} parent=5 // pred_fallthru
        _
      %p472 = scmp.le.s32.totalorder 1, %s25
      %p473 = scmp.lt.s32.totalorder %s25, 3
      %p474 = pnand %p472, %p473
      %p475 = pneg %p474
      // Predicated region
      $region81: #{tpu_custom_call.1} parent=5 // pred_check
        _
      $region82: #{tpu_custom_call.1} parent=5 // pred_check_branch
        %477 = sbr.rel (%p474) target = $region84
      $region83: #{tpu_custom_call.1} parent=5 // pred_region
        %s478 = ssub.s32 %s25, 1
        %p479 = scmp.lt.s32.totalorder %s30, 1
        %s480 = scalar_select %p479, %s30, 1
        %s481 = smul.addr %s480, 8
        %s482 = scalar_lea.vmem %s0, %s481
        %p483 = pneg %p51
        %p484 = pneg %p48
        %p485 = scmp.lt.s32.totalorder %s30, 1
        %s486 = scalar_select %p485, %s30, 1
        %s487 = smul.addr %s486, 8
        %s488 = scalar_lea.vmem %s1, %s487
        %p489 = pneg %p77
        %p490 = pneg %p74
        %p491 = pneg %p98
        %p492 = pneg %p95
        %p493 = pneg %p119
        %p494 = pneg %p116
        %p495 = pneg %p140
        %p496 = pneg %p137
        %p497 = pneg %p161
        %p498 = pneg %p158
        %p499 = pneg %p182
        %p500 = pneg %p179
        %p501 = pneg %p203
        %p502 = pneg %p200
        %p503 = pneg %p224
        %p504 = pneg %p221
        %p505 = pneg %p245
        %p506 = pneg %p242
        %p507 = pneg %p266
        %p508 = pneg %p263
        %p509 = pneg %p287
        %p510 = pneg %p284
        %p511 = pneg %p308
        %p512 = pneg %p305
        %p513 = pneg %p329
        %p514 = pneg %p326
        %p515 = pneg %p350
        %p516 = pneg %p347
        %p517 = pneg %p371
        %p518 = pneg %p368
        %p519 = pneg %p397
        %p520 = pneg %p394
        %s521 = sand.u32 %s384, 1
        %s522 = scalar_lea.sflag [#allocation3], %s521
        %s523 = sand.u32 %s384, 1
        %s524 = smul.addr %s523, 8
        %s525 = scalar_lea.vmem [#allocation2], %s524
        %p526 = scmp.lt.s32.totalorder %s30, 1
        %s527 = scalar_select %p526, %s30, 1
        %s528 = smul.addr %s527, 8
        %s529 = scalar_lea.vmem %s0, %s528
        %p530 = scmp.lt.s32.totalorder %s30, 1
        %s531 = scalar_select %p530, %s30, 1
        %s532 = smul.addr %s531, 8
        %s533 = scalar_lea.vmem %s1, %s532
        %v534 = vld [vmem:[%s529] sm:$0xff]
        %v535 = vld [vmem:[%s533] sm:$0xff]
        %v536 = vld [vmem:[%s12] sm:$0xff]
        %v537 = vld [vmem:[%s12 + $0x8] sm:$0xff]
        %v538 = vld [vmem:[%s12 + $0x10] sm:$0xff]
        %v539 = vld [vmem:[%s12 + $0x18] sm:$0xff]
        %vm540 = vcmask 130048
        %v542 = vsel %vm540, %v535, 0
        %544 = vmatprep.subr.mxu0 0.0
        %545 = vmatpush1.msra.mxu0 0.0
        %546 = vmatprep.subr.mxu0 0.0
        %547 = vmatpush1.msra.mxu0 0.0
        %548 = vmatprep.subr.mxu0 0.0
        %549 = vmatpush1.msra.mxu0 0.0
        %550 = vmatprep.subr.mxu0 0.0
        %551 = vmatpush1.msra.mxu0 0.0
        %552 = vmatprep.subr.mxu0 0.0
        %553 = vmatpush1.msra.mxu0 0.0
        %554 = vmatprep.subr.mxu0 0.0
        %555 = vmatpush1.msra.mxu0 0.0
        %556 = vmatprep.subr.mxu0 0.0
        %557 = vmatpush1.msra.mxu0 0.0
        %558 = vmatprep.subr.mxu0 0.0
        %559 = vmatpush1.msra.mxu0 0.0
        %560 = vmatprep.subr.mxu0 0.0
        %561 = vmatpush1.msra.mxu0 0.0
        %562 = vmatprep.subr.mxu0 0.0
        %563 = vmatpush1.msra.mxu0 0.0
        %564 = vmatprep.subr.mxu0 0.0
        %565 = vmatpush1.msra.mxu0 0.0
        %566 = vmatprep.subr.mxu0 0.0
        %567 = vmatpush1.msra.mxu0 0.0
        %568 = vmatprep.subr.mxu0 0.0
        %569 = vmatpush1.msra.mxu0 0.0
        %570 = vmatprep.subr.mxu0 0.0
        %571 = vmatpush1.msra.mxu0 0.0
        %572 = vmatprep.subr.mxu0 %v539
        %573 = vmatpush1.msra.mxu0 %v538
        %574 = vmatprep.subr.mxu0 %v537
        %575 = vmatpush1.msra.mxu0 %v536
        %576 = vmatprep.subr.mxu0 0.0
        %577 = vmatpush2.msra.mxu0 0.0
        %578 = vmatprep.subr.mxu0 0.0
        %579 = vmatpush2.msra.mxu0 0.0
        %580 = vmatprep.subr.mxu0 0.0
        %581 = vmatpush2.msra.mxu0 0.0
        %582 = vmatprep.subr.mxu0 0.0
        %583 = vmatpush2.msra.mxu0 0.0
        %584 = vmatprep.subr.mxu0 0.0
        %585 = vmatpush2.msra.mxu0 0.0
        %586 = vmatprep.subr.mxu0 0.0
        %587 = vmatpush2.msra.mxu0 0.0
        %588 = vmatprep.subr.mxu0 0.0
        %589 = vmatpush2.msra.mxu0 0.0
        %590 = vmatprep.subr.mxu0 0.0
        %591 = vmatpush2.msra.mxu0 0.0
        %592 = vmatprep.subr.mxu0 0.0
        %593 = vmatpush2.msra.mxu0 0.0
        %594 = vmatprep.subr.mxu0 0.0
        %595 = vmatpush2.msra.mxu0 0.0
        %596 = vmatprep.subr.mxu0 0.0
        %597 = vmatpush2.msra.mxu0 0.0
        %598 = vmatprep.subr.mxu0 0.0
        %599 = vmatpush2.msra.mxu0 0.0
        %600 = vmatprep.subr.mxu0 0.0
        %601 = vmatpush2.msra.mxu0 0.0
        %602 = vmatprep.subr.mxu0 0.0
        %603 = vmatpush2.msra.mxu0 0.0
        %604 = vmatprep.subr.mxu0 0.0
        %605 = vmatpush2.msra.mxu0 0.0
        %606 = vmatprep.subr.mxu0 0.0
        %607 = vmatpush2.msra.mxu0 0.0
        %608 = vmatprep.mubr.f32.mxu0 0.0
        %609 = vmatmul.mubr.f32.gmra.mxu0 %v542
        %v610 = vpop.f32.mrf.mxu0
        %v611 = vadd.f32 0.0, %v610
        %v612 = vpop.f32.mrf.mxu0
        %v613 = vadd.f32 0.0, %v612
        %614 = vdwg.mxu0
        %v615 = vld [vmem:[%s8] sm:$0x3]
        %v617 = vlaneseq
        %v618 = vshrl.u32 %v617, 7
        %v619 = vsub.s32 0, %v618
        %v620 = vrot.slane %v615, %v619
        %v621 = vlaneseq
        %v622 = vshrl.u32 %v621, 7
        %v623 = vsub.s32 1, %v622
        %v624 = vrot.slane %v615, %v623
        %v627 = vsub.f32 %v611, %v620
        %v628 = vsub.f32 %v613, %v624
        %v629 = vld [vmem:[%s9] sm:$0x3]
        %v631 = vlaneseq
        %v632 = vshrl.u32 %v631, 7
        %v633 = vsub.s32 0, %v632
        %v634 = vrot.slane %v629, %v633
        %v635 = vlaneseq
        %v636 = vshrl.u32 %v635, 7
        %v637 = vsub.s32 1, %v636
        %v638 = vrot.slane %v629, %v637
        %v641 = vmul.f32 %v627, %v634
        %v642 = vmul.f32 %v628, %v638
        %v643 = vld [vmem:[%s10] sm:$0x3]
        %v644 = vmul.f32 %v627, %v641
        %v645 = vmul.f32 %v628, %v642
        %v646 = vmul.f32 %v644, 0.5
        %v647 = vmul.f32 %v645, 0.5
        %v649 = vlaneseq
        %v650 = vshrl.u32 %v649, 7
        %v651 = vsub.s32 0, %v650
        %v652 = vrot.slane %v643, %v651
        %v653 = vlaneseq
        %v654 = vshrl.u32 %v653, 7
        %v655 = vsub.s32 1, %v654
        %v656 = vrot.slane %v643, %v655
        %v659 = vsub.f32 %v652, %v646
        %v660 = vsub.f32 %v656, %v647
        %v661 = vmul.f32 %v659, 1.442695
        %v662 = vpow.pop %v661
        %v663 = vmul.f32 %v660, 1.442695
        %v664 = vpow.pop %v663
        %v665 = vld [vmem:[%s13] sm:$0xff]
        %v666 = vld [vmem:[%s13 + $0x8] sm:$0xff]
        %v667 = vld [vmem:[%s13 + $0x10] sm:$0xff]
        %v668 = vld [vmem:[%s13 + $0x18] sm:$0xff]
        %v669 = vld [vmem:[%s13 + $0x20] sm:$0xff]
        %v670 = vld [vmem:[%s13 + $0x28] sm:$0xff]
        %v671 = vld [vmem:[%s13 + $0x30] sm:$0xff]
        %v672 = vld [vmem:[%s13 + $0x38] sm:$0xff]
        %v673 = vld [vmem:[%s13 + $0x40] sm:$0xff]
        %v674 = vld [vmem:[%s13 + $0x48] sm:$0xff]
        %v675 = vld [vmem:[%s13 + $0x50] sm:$0xff]
        %v676 = vld [vmem:[%s13 + $0x58] sm:$0xff]
        %v677 = vld [vmem:[%s13 + $0x60] sm:$0xff]
        %v678 = vld [vmem:[%s13 + $0x68] sm:$0xff]
        %v679 = vld [vmem:[%s13 + $0x70] sm:$0xff]
        %v680 = vld [vmem:[%s13 + $0x78] sm:$0xff]
        %v681 = vld [vmem:[%s13 + $0x80] sm:$0xff]
        %v682 = vld [vmem:[%s13 + $0x88] sm:$0xff]
        %v683 = vld [vmem:[%s13 + $0x90] sm:$0xff]
        %v684 = vld [vmem:[%s13 + $0x98] sm:$0xff]
        %v685 = vld [vmem:[%s13 + $0xa0] sm:$0xff]
        %v686 = vld [vmem:[%s13 + $0xa8] sm:$0xff]
        %v687 = vld [vmem:[%s13 + $0xb0] sm:$0xff]
        %v688 = vld [vmem:[%s13 + $0xb8] sm:$0xff]
        %v689 = vld [vmem:[%s13 + $0xc0] sm:$0xff]
        %v690 = vld [vmem:[%s13 + $0xc8] sm:$0xff]
        %v691 = vld [vmem:[%s13 + $0xd0] sm:$0xff]
        %v692 = vld [vmem:[%s13 + $0xd8] sm:$0xff]
        %v693 = vld [vmem:[%s13 + $0xe0] sm:$0xff]
        %v694 = vld [vmem:[%s13 + $0xe8] sm:$0xff]
        %v695 = vld [vmem:[%s13 + $0xf0] sm:$0xff]
        %v696 = vld [vmem:[%s13 + $0xf8] sm:$0xff]
        %697 = vmatprep.subr.mxu0 0.0
        %698 = vmatpush1.msra.mxu0 %v680
        %699 = vmatprep.subr.mxu0 0.0
        %700 = vmatpush1.msra.mxu0 %v679
        %701 = vmatprep.subr.mxu0 0.0
        %702 = vmatpush1.msra.mxu0 %v678
        %703 = vmatprep.subr.mxu0 0.0
        %704 = vmatpush1.msra.mxu0 %v677
        %705 = vmatprep.subr.mxu0 0.0
        %706 = vmatpush1.msra.mxu0 %v676
        %707 = vmatprep.subr.mxu0 0.0
        %708 = vmatpush1.msra.mxu0 %v675
        %709 = vmatprep.subr.mxu0 0.0
        %710 = vmatpush1.msra.mxu0 %v674
        %711 = vmatprep.subr.mxu0 0.0
        %712 = vmatpush1.msra.mxu0 %v673
        %713 = vmatprep.subr.mxu0 0.0
        %714 = vmatpush1.msra.mxu0 %v672
        %715 = vmatprep.subr.mxu0 0.0
        %716 = vmatpush1.msra.mxu0 %v671
        %717 = vmatprep.subr.mxu0 0.0
        %718 = vmatpush1.msra.mxu0 %v670
        %719 = vmatprep.subr.mxu0 0.0
        %720 = vmatpush1.msra.mxu0 %v669
        %721 = vmatprep.subr.mxu0 0.0
        %722 = vmatpush1.msra.mxu0 %v668
        %723 = vmatprep.subr.mxu0 0.0
        %724 = vmatpush1.msra.mxu0 %v667
        %725 = vmatprep.subr.mxu0 0.0
        %726 = vmatpush1.msra.mxu0 %v666
        %727 = vmatprep.subr.mxu0 0.0
        %728 = vmatpush1.msra.mxu0 %v665
        %729 = vmatprep.subr.mxu0 0.0
        %730 = vmatpush2.msra.mxu0 %v696
        %731 = vmatprep.subr.mxu0 0.0
        %732 = vmatpush2.msra.mxu0 %v695
        %733 = vmatprep.subr.mxu0 0.0
        %734 = vmatpush2.msra.mxu0 %v694
        %735 = vmatprep.subr.mxu0 0.0
        %736 = vmatpush2.msra.mxu0 %v693
        %737 = vmatprep.subr.mxu0 0.0
        %738 = vmatpush2.msra.mxu0 %v692
        %739 = vmatprep.subr.mxu0 0.0
        %740 = vmatpush2.msra.mxu0 %v691
        %741 = vmatprep.subr.mxu0 0.0
        %742 = vmatpush2.msra.mxu0 %v690
        %743 = vmatprep.subr.mxu0 0.0
        %744 = vmatpush2.msra.mxu0 %v689
        %745 = vmatprep.subr.mxu0 0.0
        %746 = vmatpush2.msra.mxu0 %v688
        %747 = vmatprep.subr.mxu0 0.0
        %748 = vmatpush2.msra.mxu0 %v687
        %749 = vmatprep.subr.mxu0 0.0
        %750 = vmatpush2.msra.mxu0 %v686
        %751 = vmatprep.subr.mxu0 0.0
        %752 = vmatpush2.msra.mxu0 %v685
        %753 = vmatprep.subr.mxu0 0.0
        %754 = vmatpush2.msra.mxu0 %v684
        %755 = vmatprep.subr.mxu0 0.0
        %756 = vmatpush2.msra.mxu0 %v683
        %757 = vmatprep.subr.mxu0 0.0
        %758 = vmatpush2.msra.mxu0 %v682
        %759 = vmatprep.subr.mxu0 0.0
        %760 = vmatpush2.msra.mxu0 %v681
        %761 = vmatprep.mubr.f32.mxu0 %v664
        %762 = vmatmul.mubr.f32.gmra.mxu0 %v662
        %v763 = vpop.f32.mrf.mxu0
        %v764 = vadd.f32 0.0, %v763
        %v765 = vpop.f32.mrf.mxu0
        %766 = vdwg.mxu0
        %v767 = vmax.f32 %v764, 1e-37
        %v768 = vld [vmem:[%s11] sm:$0x1]
        %v769 = vlog2.pop %v767
        %v770 = vmul.f32 %v769, 0.6931472
        %v772 = vlaneseq
        %v773 = vshrl.u32 %v772, 7
        %v774 = vsub.s32 0, %v773
        %v775 = vrot.slane %v768, %v774
        %v777 = vadd.f32 %v775, %v770
        %v778 = vsel %vm540, %v777, 0.0
        %779 = vadd.xlane.f32.xlu0 %v778
        %v780 = vpop.xlane.xlu0 %779
        %v781 = vrcp.pop %v767
        %v782 = vld [vmem:[%s14] sm:$0xff]
        %v783 = vld [vmem:[%s14 + $0x8] sm:$0xff]
        %v784 = vld [vmem:[%s14 + $0x10] sm:$0xff]
        %v785 = vld [vmem:[%s14 + $0x18] sm:$0xff]
        %v787 = vsel %vm540, %v781, 0
        %789 = vmatprep.subr.mxu0 0.0
        %790 = vmatpush1.msra.mxu0 0.0
        %791 = vmatprep.subr.mxu0 0.0
        %792 = vmatpush1.msra.mxu0 0.0
        %793 = vmatprep.subr.mxu0 0.0
        %794 = vmatpush1.msra.mxu0 0.0
        %795 = vmatprep.subr.mxu0 0.0
        %796 = vmatpush1.msra.mxu0 0.0
        %797 = vmatprep.subr.mxu0 0.0
        %798 = vmatpush1.msra.mxu0 0.0
        %799 = vmatprep.subr.mxu0 0.0
        %800 = vmatpush1.msra.mxu0 0.0
        %801 = vmatprep.subr.mxu0 0.0
        %802 = vmatpush1.msra.mxu0 0.0
        %803 = vmatprep.subr.mxu0 0.0
        %804 = vmatpush1.msra.mxu0 0.0
        %805 = vmatprep.subr.mxu0 0.0
        %806 = vmatpush1.msra.mxu0 0.0
        %807 = vmatprep.subr.mxu0 0.0
        %808 = vmatpush1.msra.mxu0 0.0
        %809 = vmatprep.subr.mxu0 0.0
        %810 = vmatpush1.msra.mxu0 0.0
        %811 = vmatprep.subr.mxu0 0.0
        %812 = vmatpush1.msra.mxu0 0.0
        %813 = vmatprep.subr.mxu0 0.0
        %814 = vmatpush1.msra.mxu0 0.0
        %815 = vmatprep.subr.mxu0 0.0
        %816 = vmatpush1.msra.mxu0 0.0
        %817 = vmatprep.subr.mxu0 %v785
        %818 = vmatpush1.msra.mxu0 %v784
        %819 = vmatprep.subr.mxu0 %v783
        %820 = vmatpush1.msra.mxu0 %v782
        %821 = vmatprep.subr.mxu0 0.0
        %822 = vmatpush2.msra.mxu0 0.0
        %823 = vmatprep.subr.mxu0 0.0
        %824 = vmatpush2.msra.mxu0 0.0
        %825 = vmatprep.subr.mxu0 0.0
        %826 = vmatpush2.msra.mxu0 0.0
        %827 = vmatprep.subr.mxu0 0.0
        %828 = vmatpush2.msra.mxu0 0.0
        %829 = vmatprep.subr.mxu0 0.0
        %830 = vmatpush2.msra.mxu0 0.0
        %831 = vmatprep.subr.mxu0 0.0
        %832 = vmatpush2.msra.mxu0 0.0
        %833 = vmatprep.subr.mxu0 0.0
        %834 = vmatpush2.msra.mxu0 0.0
        %835 = vmatprep.subr.mxu0 0.0
        %836 = vmatpush2.msra.mxu0 0.0
        %837 = vmatprep.subr.mxu0 0.0
        %838 = vmatpush2.msra.mxu0 0.0
        %839 = vmatprep.subr.mxu0 0.0
        %840 = vmatpush2.msra.mxu0 0.0
        %841 = vmatprep.subr.mxu0 0.0
        %842 = vmatpush2.msra.mxu0 0.0
        %843 = vmatprep.subr.mxu0 0.0
        %844 = vmatpush2.msra.mxu0 0.0
        %845 = vmatprep.subr.mxu0 0.0
        %846 = vmatpush2.msra.mxu0 0.0
        %847 = vmatprep.subr.mxu0 0.0
        %848 = vmatpush2.msra.mxu0 0.0
        %849 = vmatprep.subr.mxu0 0.0
        %850 = vmatpush2.msra.mxu0 0.0
        %851 = vmatprep.subr.mxu0 0.0
        %852 = vmatpush2.msra.mxu0 0.0
        %853 = vmatprep.mubr.f32.mxu0 0.0
        %854 = vmatmul.mubr.f32.gmra.mxu0 %v787
        %v855 = vpop.f32.mrf.mxu0
        %v856 = vadd.f32 0.0, %v855
        %v857 = vpop.f32.mrf.mxu0
        %v858 = vadd.f32 0.0, %v857
        %859 = vdwg.mxu0
        %v860 = vmul.f32 %v662, %v641
        %v861 = vmul.f32 %v664, %v642
        %v862 = vmul.f32 %v860, %v856
        %v863 = vmul.f32 %v861, %v858
        %v864 = vld [vmem:[%s15] sm:$0xff]
        %v865 = vld [vmem:[%s15 + $0x8] sm:$0xff]
        %v866 = vld [vmem:[%s15 + $0x10] sm:$0xff]
        %v867 = vld [vmem:[%s15 + $0x18] sm:$0xff]
        %v868 = vld [vmem:[%s15 + $0x20] sm:$0xff]
        %v869 = vld [vmem:[%s15 + $0x28] sm:$0xff]
        %v870 = vld [vmem:[%s15 + $0x30] sm:$0xff]
        %v871 = vld [vmem:[%s15 + $0x38] sm:$0xff]
        %v872 = vld [vmem:[%s15 + $0x40] sm:$0xff]
        %v873 = vld [vmem:[%s15 + $0x48] sm:$0xff]
        %v874 = vld [vmem:[%s15 + $0x50] sm:$0xff]
        %v875 = vld [vmem:[%s15 + $0x58] sm:$0xff]
        %v876 = vld [vmem:[%s15 + $0x60] sm:$0xff]
        %v877 = vld [vmem:[%s15 + $0x68] sm:$0xff]
        %v878 = vld [vmem:[%s15 + $0x70] sm:$0xff]
        %v879 = vld [vmem:[%s15 + $0x78] sm:$0xff]
        %v880 = vld [vmem:[%s15 + $0x80] sm:$0xff]
        %v881 = vld [vmem:[%s15 + $0x88] sm:$0xff]
        %v882 = vld [vmem:[%s15 + $0x90] sm:$0xff]
        %v883 = vld [vmem:[%s15 + $0x98] sm:$0xff]
        %v884 = vld [vmem:[%s15 + $0xa0] sm:$0xff]
        %v885 = vld [vmem:[%s15 + $0xa8] sm:$0xff]
        %v886 = vld [vmem:[%s15 + $0xb0] sm:$0xff]
        %v887 = vld [vmem:[%s15 + $0xb8] sm:$0xff]
        %v888 = vld [vmem:[%s15 + $0xc0] sm:$0xff]
        %v889 = vld [vmem:[%s15 + $0xc8] sm:$0xff]
        %v890 = vld [vmem:[%s15 + $0xd0] sm:$0xff]
        %v891 = vld [vmem:[%s15 + $0xd8] sm:$0xff]
        %v892 = vld [vmem:[%s15 + $0xe0] sm:$0xff]
        %v893 = vld [vmem:[%s15 + $0xe8] sm:$0xff]
        %v894 = vld [vmem:[%s15 + $0xf0] sm:$0xff]
        %v895 = vld [vmem:[%s15 + $0xf8] sm:$0xff]
        %896 = vmatprep.subr.mxu0 0.0
        %897 = vmatpush1.msra.mxu0 %v879
        %898 = vmatprep.subr.mxu0 0.0
        %899 = vmatpush1.msra.mxu0 %v878
        %900 = vmatprep.subr.mxu0 0.0
        %901 = vmatpush1.msra.mxu0 %v877
        %902 = vmatprep.subr.mxu0 0.0
        %903 = vmatpush1.msra.mxu0 %v876
        %904 = vmatprep.subr.mxu0 0.0
        %905 = vmatpush1.msra.mxu0 %v875
        %906 = vmatprep.subr.mxu0 0.0
        %907 = vmatpush1.msra.mxu0 %v874
        %908 = vmatprep.subr.mxu0 0.0
        %909 = vmatpush1.msra.mxu0 %v873
        %910 = vmatprep.subr.mxu0 0.0
        %911 = vmatpush1.msra.mxu0 %v872
        %912 = vmatprep.subr.mxu0 0.0
        %913 = vmatpush1.msra.mxu0 %v871
        %914 = vmatprep.subr.mxu0 0.0
        %915 = vmatpush1.msra.mxu0 %v870
        %916 = vmatprep.subr.mxu0 0.0
        %917 = vmatpush1.msra.mxu0 %v869
        %918 = vmatprep.subr.mxu0 0.0
        %919 = vmatpush1.msra.mxu0 %v868
        %920 = vmatprep.subr.mxu0 0.0
        %921 = vmatpush1.msra.mxu0 %v867
        %922 = vmatprep.subr.mxu0 0.0
        %923 = vmatpush1.msra.mxu0 %v866
        %924 = vmatprep.subr.mxu0 0.0
        %925 = vmatpush1.msra.mxu0 %v865
        %926 = vmatprep.subr.mxu0 0.0
        %927 = vmatpush1.msra.mxu0 %v864
        %928 = vmatprep.subr.mxu0 0.0
        %929 = vmatpush2.msra.mxu0 %v895
        %930 = vmatprep.subr.mxu0 0.0
        %931 = vmatpush2.msra.mxu0 %v894
        %932 = vmatprep.subr.mxu0 0.0
        %933 = vmatpush2.msra.mxu0 %v893
        %934 = vmatprep.subr.mxu0 0.0
        %935 = vmatpush2.msra.mxu0 %v892
        %936 = vmatprep.subr.mxu0 0.0
        %937 = vmatpush2.msra.mxu0 %v891
        %938 = vmatprep.subr.mxu0 0.0
        %939 = vmatpush2.msra.mxu0 %v890
        %940 = vmatprep.subr.mxu0 0.0
        %941 = vmatpush2.msra.mxu0 %v889
        %942 = vmatprep.subr.mxu0 0.0
        %943 = vmatpush2.msra.mxu0 %v888
        %944 = vmatprep.subr.mxu0 0.0
        %945 = vmatpush2.msra.mxu0 %v887
        %946 = vmatprep.subr.mxu0 0.0
        %947 = vmatpush2.msra.mxu0 %v886
        %948 = vmatprep.subr.mxu0 0.0
        %949 = vmatpush2.msra.mxu0 %v885
        %950 = vmatprep.subr.mxu0 0.0
        %951 = vmatpush2.msra.mxu0 %v884
        %952 = vmatprep.subr.mxu0 0.0
        %953 = vmatpush2.msra.mxu0 %v883
        %954 = vmatprep.subr.mxu0 0.0
        %955 = vmatpush2.msra.mxu0 %v882
        %956 = vmatprep.subr.mxu0 0.0
        %957 = vmatpush2.msra.mxu0 %v881
        %958 = vmatprep.subr.mxu0 0.0
        %959 = vmatpush2.msra.mxu0 %v880
        %960 = vmatprep.mubr.f32.mxu0 %v863
        %961 = vmatmul.mubr.f32.gmra.mxu0 %v862
        %v962 = vpop.f32.mrf.mxu0
        %v963 = vadd.f32 0.0, %v962
        %v964 = vpop.f32.mrf.mxu0
        %965 = vdwg.mxu0
        %v966 = vld [vmem:[%s2] sm:$0xff]
        %v967 = vld [vmem:[%s2 + $0x8] sm:$0xff]
        %v968 = vld [vmem:[%s4] sm:$0x1]
        %v970 = vlaneseq
        %v971 = vshrl.u32 %v970, 7
        %v972 = vsub.s32 0, %v971
        %v973 = vrot.slane %v968, %v972
        %975 = vmatprep.subr.mxu0 0.0
        %976 = vmatpush1.msra.mxu0 0.0
        %977 = vmatprep.subr.mxu0 0.0
        %978 = vmatpush1.msra.mxu0 0.0
        %979 = vmatprep.subr.mxu0 0.0
        %980 = vmatpush1.msra.mxu0 0.0
        %981 = vmatprep.subr.mxu0 0.0
        %982 = vmatpush1.msra.mxu0 0.0
        %983 = vmatprep.subr.mxu0 0.0
        %984 = vmatpush1.msra.mxu0 0.0
        %985 = vmatprep.subr.mxu0 0.0
        %986 = vmatpush1.msra.mxu0 0.0
        %987 = vmatprep.subr.mxu0 0.0
        %988 = vmatpush1.msra.mxu0 0.0
        %989 = vmatprep.subr.mxu0 0.0
        %990 = vmatpush1.msra.mxu0 0.0
        %991 = vmatprep.subr.mxu0 0.0
        %992 = vmatpush1.msra.mxu0 0.0
        %993 = vmatprep.subr.mxu0 0.0
        %994 = vmatpush1.msra.mxu0 0.0
        %995 = vmatprep.subr.mxu0 0.0
        %996 = vmatpush1.msra.mxu0 0.0
        %997 = vmatprep.subr.mxu0 0.0
        %998 = vmatpush1.msra.mxu0 0.0
        %999 = vmatprep.subr.mxu0 0.0
        %1000 = vmatpush1.msra.mxu0 0.0
        %1001 = vmatprep.subr.mxu0 0.0
        %1002 = vmatpush1.msra.mxu0 0.0
        %1003 = vmatprep.subr.mxu0 0.0
        %1004 = vmatpush1.msra.mxu0 %v967
        %1005 = vmatprep.subr.mxu0 0.0
        %1006 = vmatpush1.msra.mxu0 %v966
        %1007 = vmatprep.subr.mxu0 0.0
        %1008 = vmatpush2.msra.mxu0 0.0
        %1009 = vmatprep.subr.mxu0 0.0
        %1010 = vmatpush2.msra.mxu0 0.0
        %1011 = vmatprep.subr.mxu0 0.0
        %1012 = vmatpush2.msra.mxu0 0.0
        %1013 = vmatprep.subr.mxu0 0.0
        %1014 = vmatpush2.msra.mxu0 0.0
        %1015 = vmatprep.subr.mxu0 0.0
        %1016 = vmatpush2.msra.mxu0 0.0
        %1017 = vmatprep.subr.mxu0 0.0
        %1018 = vmatpush2.msra.mxu0 0.0
        %1019 = vmatprep.subr.mxu0 0.0
        %1020 = vmatpush2.msra.mxu0 0.0
        %1021 = vmatprep.subr.mxu0 0.0
        %1022 = vmatpush2.msra.mxu0 0.0
        %1023 = vmatprep.subr.mxu0 0.0
        %1024 = vmatpush2.msra.mxu0 0.0
        %1025 = vmatprep.subr.mxu0 0.0
        %1026 = vmatpush2.msra.mxu0 0.0
        %1027 = vmatprep.subr.mxu0 0.0
        %1028 = vmatpush2.msra.mxu0 0.0
        %1029 = vmatprep.subr.mxu0 0.0
        %1030 = vmatpush2.msra.mxu0 0.0
        %1031 = vmatprep.subr.mxu0 0.0
        %1032 = vmatpush2.msra.mxu0 0.0
        %1033 = vmatprep.subr.mxu0 0.0
        %1034 = vmatpush2.msra.mxu0 0.0
        %1035 = vmatprep.subr.mxu0 0.0
        %1036 = vmatpush2.msra.mxu0 0.0
        %1037 = vmatprep.subr.mxu0 0.0
        %1038 = vmatpush2.msra.mxu0 0.0
        %1039 = vmatprep.mubr.f32.mxu0 0.0
        %1040 = vmatmul.mubr.f32.gmra.mxu0 %v542
        %v1041 = vpop.f32.mrf.mxu0
        %v1042 = vadd.f32 %v973, %v1041
        %v1043 = vpop.f32.mrf.mxu0
        %1044 = vdwg.mxu0
        %v1045 = vmax.f32 %v1042, 0.0
        %v1046 = vld [vmem:[%s5] sm:$0xff]
        %v1047 = vld [vmem:[%s5 + $0x8] sm:$0xff]
        %v1048 = vld [vmem:[%s5 + $0x10] sm:$0xff]
        %v1049 = vld [vmem:[%s5 + $0x18] sm:$0xff]
        %v1050 = vld [vmem:[%s7] sm:$0x1]
        %v1052 = vlaneseq
        %v1053 = vshrl.u32 %v1052, 7
        %v1054 = vsub.s32 0, %v1053
        %v1055 = vrot.slane %v1050, %v1054
        %vm1057 = vcmask 261120
        %v1059 = vsel %vm1057, %v1045, 0
        %1061 = vmatprep.subr.mxu0 0.0
        %1062 = vmatpush1.msra.mxu0 0.0
        %1063 = vmatprep.subr.mxu0 0.0
        %1064 = vmatpush1.msra.mxu0 0.0
        %1065 = vmatprep.subr.mxu0 0.0
        %1066 = vmatpush1.msra.mxu0 0.0
        %1067 = vmatprep.subr.mxu0 0.0
        %1068 = vmatpush1.msra.mxu0 0.0
        %1069 = vmatprep.subr.mxu0 0.0
        %1070 = vmatpush1.msra.mxu0 0.0
        %1071 = vmatprep.subr.mxu0 0.0
        %1072 = vmatpush1.msra.mxu0 0.0
        %1073 = vmatprep.subr.mxu0 0.0
        %1074 = vmatpush1.msra.mxu0 0.0
        %1075 = vmatprep.subr.mxu0 0.0
        %1076 = vmatpush1.msra.mxu0 0.0
        %1077 = vmatprep.subr.mxu0 0.0
        %1078 = vmatpush1.msra.mxu0 0.0
        %1079 = vmatprep.subr.mxu0 0.0
        %1080 = vmatpush1.msra.mxu0 0.0
        %1081 = vmatprep.subr.mxu0 0.0
        %1082 = vmatpush1.msra.mxu0 0.0
        %1083 = vmatprep.subr.mxu0 0.0
        %1084 = vmatpush1.msra.mxu0 0.0
        %1085 = vmatprep.subr.mxu0 0.0
        %1086 = vmatpush1.msra.mxu0 %v1049
        %1087 = vmatprep.subr.mxu0 0.0
        %1088 = vmatpush1.msra.mxu0 %v1048
        %1089 = vmatprep.subr.mxu0 0.0
        %1090 = vmatpush1.msra.mxu0 %v1047
        %1091 = vmatprep.subr.mxu0 0.0
        %1092 = vmatpush1.msra.mxu0 %v1046
        %1093 = vmatprep.subr.mxu0 0.0
        %1094 = vmatpush2.msra.mxu0 0.0
        %1095 = vmatprep.subr.mxu0 0.0
        %1096 = vmatpush2.msra.mxu0 0.0
        %1097 = vmatprep.subr.mxu0 0.0
        %1098 = vmatpush2.msra.mxu0 0.0
        %1099 = vmatprep.subr.mxu0 0.0
        %1100 = vmatpush2.msra.mxu0 0.0
        %1101 = vmatprep.subr.mxu0 0.0
        %1102 = vmatpush2.msra.mxu0 0.0
        %1103 = vmatprep.subr.mxu0 0.0
        %1104 = vmatpush2.msra.mxu0 0.0
        %1105 = vmatprep.subr.mxu0 0.0
        %1106 = vmatpush2.msra.mxu0 0.0
        %1107 = vmatprep.subr.mxu0 0.0
        %1108 = vmatpush2.msra.mxu0 0.0
        %1109 = vmatprep.subr.mxu0 0.0
        %1110 = vmatpush2.msra.mxu0 0.0
        %1111 = vmatprep.subr.mxu0 0.0
        %1112 = vmatpush2.msra.mxu0 0.0
        %1113 = vmatprep.subr.mxu0 0.0
        %1114 = vmatpush2.msra.mxu0 0.0
        %1115 = vmatprep.subr.mxu0 0.0
        %1116 = vmatpush2.msra.mxu0 0.0
        %1117 = vmatprep.subr.mxu0 0.0
        %1118 = vmatpush2.msra.mxu0 0.0
        %1119 = vmatprep.subr.mxu0 0.0
        %1120 = vmatpush2.msra.mxu0 0.0
        %1121 = vmatprep.subr.mxu0 0.0
        %1122 = vmatpush2.msra.mxu0 0.0
        %1123 = vmatprep.subr.mxu0 0.0
        %1124 = vmatpush2.msra.mxu0 0.0
        %1125 = vmatprep.mubr.f32.mxu0 0.0
        %1126 = vmatmul.mubr.f32.gmra.mxu0 %v1059
        %v1127 = vpop.f32.mrf.mxu0
        %v1128 = vadd.f32 %v1055, %v1127
        %v1129 = vpop.f32.mrf.mxu0
        %1130 = vdwg.mxu0
        %v1131 = vsub.f32 %v535, %v1128
        %v1132 = vmul.f32 %v1131, %v1131
        %v1133 = vsel %vm540, %v1132, 0.0
        %1134 = vadd.xlane.f32.xlu0 %v1133
        %v1135 = vpop.xlane.xlu0 %1134
        %v1136 = vmul.f32 %v1135, -0.5
        %v1137 = vsub.f32 %v1136, 14.703016
        %v1138 = vlog2.pop %v1128
        %v1139 = vmul.f32 %v1138, 0.6931472
        %v1140 = vmax.f32 %v1139, -100.0
        %v1141 = vsub.f32 1.0, %v1128
        %v1142 = vlog2.pop %v1141
        %v1143 = vmul.f32 %v1142, 0.6931472
        %v1144 = vmax.f32 %v1143, -100.0
        %v1145 = vmul.f32 %v534, %v1140
        %v1146 = vsub.f32 1.0, %v534
        %v1147 = vmul.f32 %v1146, %v1144
        %v1148 = vadd.f32 %v1145, %v1147
        %v1149 = vsel %vm540, %v1148, 0.0
        %1150 = vadd.xlane.f32.xlu0 %v1149
        %v1151 = vpop.xlane.xlu0 %1150
        %v1152 = vsub.f32 %v780, %v1137
        %v1153 = vmul.f32 %v1152, 0.0625
        %v1154 = vadd.f32 %v1151, %v1153
        %v1155 = vsub.f32 %v534, %v1128
        %v1156 = vmul.f32 %v1128, %v1141
        %v1157 = vrcp.pop %v1156
        %v1158 = vmul.f32 %v1155, %v1157
        %v1159 = vmul.f32 %v1131, 0.0625
        %v1160 = vsub.f32 %v1158, %v1159
        %v1161 = vld [vmem:[%s6] sm:$0xff]
        %v1162 = vld [vmem:[%s6 + $0x8] sm:$0xff]
        %v1164 = vsel %vm540, %v1160, 0
        %1166 = vmatprep.subr.mxu0 0.0
        %1167 = vmatpush1.msra.mxu0 0.0
        %1168 = vmatprep.subr.mxu0 0.0
        %1169 = vmatpush1.msra.mxu0 0.0
        %1170 = vmatprep.subr.mxu0 0.0
        %1171 = vmatpush1.msra.mxu0 0.0
        %1172 = vmatprep.subr.mxu0 0.0
        %1173 = vmatpush1.msra.mxu0 0.0
        %1174 = vmatprep.subr.mxu0 0.0
        %1175 = vmatpush1.msra.mxu0 0.0
        %1176 = vmatprep.subr.mxu0 0.0
        %1177 = vmatpush1.msra.mxu0 0.0
        %1178 = vmatprep.subr.mxu0 0.0
        %1179 = vmatpush1.msra.mxu0 0.0
        %1180 = vmatprep.subr.mxu0 0.0
        %1181 = vmatpush1.msra.mxu0 0.0
        %1182 = vmatprep.subr.mxu0 0.0
        %1183 = vmatpush1.msra.mxu0 0.0
        %1184 = vmatprep.subr.mxu0 0.0
        %1185 = vmatpush1.msra.mxu0 0.0
        %1186 = vmatprep.subr.mxu0 0.0
        %1187 = vmatpush1.msra.mxu0 0.0
        %1188 = vmatprep.subr.mxu0 0.0
        %1189 = vmatpush1.msra.mxu0 0.0
        %1190 = vmatprep.subr.mxu0 0.0
        %1191 = vmatpush1.msra.mxu0 0.0
        %1192 = vmatprep.subr.mxu0 0.0
        %1193 = vmatpush1.msra.mxu0 0.0
        %1194 = vmatprep.subr.mxu0 0.0
        %1195 = vmatpush1.msra.mxu0 %v1162
        %1196 = vmatprep.subr.mxu0 0.0
        %1197 = vmatpush1.msra.mxu0 %v1161
        %1198 = vmatprep.subr.mxu0 0.0
        %1199 = vmatpush2.msra.mxu0 0.0
        %1200 = vmatprep.subr.mxu0 0.0
        %1201 = vmatpush2.msra.mxu0 0.0
        %1202 = vmatprep.subr.mxu0 0.0
        %1203 = vmatpush2.msra.mxu0 0.0
        %1204 = vmatprep.subr.mxu0 0.0
        %1205 = vmatpush2.msra.mxu0 0.0
        %1206 = vmatprep.subr.mxu0 0.0
        %1207 = vmatpush2.msra.mxu0 0.0
        %1208 = vmatprep.subr.mxu0 0.0
        %1209 = vmatpush2.msra.mxu0 0.0
        %1210 = vmatprep.subr.mxu0 0.0
        %1211 = vmatpush2.msra.mxu0 0.0
        %1212 = vmatprep.subr.mxu0 0.0
        %1213 = vmatpush2.msra.mxu0 0.0
        %1214 = vmatprep.subr.mxu0 0.0
        %1215 = vmatpush2.msra.mxu0 0.0
        %1216 = vmatprep.subr.mxu0 0.0
        %1217 = vmatpush2.msra.mxu0 0.0
        %1218 = vmatprep.subr.mxu0 0.0
        %1219 = vmatpush2.msra.mxu0 0.0
        %1220 = vmatprep.subr.mxu0 0.0
        %1221 = vmatpush2.msra.mxu0 0.0
        %1222 = vmatprep.subr.mxu0 0.0
        %1223 = vmatpush2.msra.mxu0 0.0
        %1224 = vmatprep.subr.mxu0 0.0
        %1225 = vmatpush2.msra.mxu0 0.0
        %1226 = vmatprep.subr.mxu0 0.0
        %1227 = vmatpush2.msra.mxu0 0.0
        %1228 = vmatprep.subr.mxu0 0.0
        %1229 = vmatpush2.msra.mxu0 0.0
        %1230 = vmatprep.mubr.f32.mxu0 0.0
        %1231 = vmatmul.mubr.f32.gmra.mxu0 %v1164
        %v1232 = vpop.f32.mrf.mxu0
        %v1233 = vadd.f32 0.0, %v1232
        %v1234 = vpop.f32.mrf.mxu0
        %1235 = vdwg.mxu0
        %vm1236 = vcmp.gt.f32.partialorder %v1042, 0.0
        %v1237 = vsel %vm1236, %v1233, 0.0
        %v1238 = vld [vmem:[%s3] sm:$0xff]
        %v1239 = vld [vmem:[%s3 + $0x8] sm:$0xff]
        %v1240 = vld [vmem:[%s3 + $0x10] sm:$0xff]
        %v1241 = vld [vmem:[%s3 + $0x18] sm:$0xff]
        %v1243 = vsel %vm1057, %v1237, 0
        %1245 = vmatprep.subr.mxu0 0.0
        %1246 = vmatpush1.msra.mxu0 0.0
        %1247 = vmatprep.subr.mxu0 0.0
        %1248 = vmatpush1.msra.mxu0 0.0
        %1249 = vmatprep.subr.mxu0 0.0
        %1250 = vmatpush1.msra.mxu0 0.0
        %1251 = vmatprep.subr.mxu0 0.0
        %1252 = vmatpush1.msra.mxu0 0.0
        %1253 = vmatprep.subr.mxu0 0.0
        %1254 = vmatpush1.msra.mxu0 0.0
        %1255 = vmatprep.subr.mxu0 0.0
        %1256 = vmatpush1.msra.mxu0 0.0
        %1257 = vmatprep.subr.mxu0 0.0
        %1258 = vmatpush1.msra.mxu0 0.0
        %1259 = vmatprep.subr.mxu0 0.0
        %1260 = vmatpush1.msra.mxu0 0.0
        %1261 = vmatprep.subr.mxu0 0.0
        %1262 = vmatpush1.msra.mxu0 0.0
        %1263 = vmatprep.subr.mxu0 0.0
        %1264 = vmatpush1.msra.mxu0 0.0
        %1265 = vmatprep.subr.mxu0 0.0
        %1266 = vmatpush1.msra.mxu0 0.0
        %1267 = vmatprep.subr.mxu0 0.0
        %1268 = vmatpush1.msra.mxu0 0.0
        %1269 = vmatprep.subr.mxu0 0.0
        %1270 = vmatpush1.msra.mxu0 %v1241
        %1271 = vmatprep.subr.mxu0 0.0
        %1272 = vmatpush1.msra.mxu0 %v1240
        %1273 = vmatprep.subr.mxu0 0.0
        %1274 = vmatpush1.msra.mxu0 %v1239
        %1275 = vmatprep.subr.mxu0 0.0
        %1276 = vmatpush1.msra.mxu0 %v1238
        %1277 = vmatprep.subr.mxu0 0.0
        %1278 = vmatpush2.msra.mxu0 0.0
        %1279 = vmatprep.subr.mxu0 0.0
        %1280 = vmatpush2.msra.mxu0 0.0
        %1281 = vmatprep.subr.mxu0 0.0
        %1282 = vmatpush2.msra.mxu0 0.0
        %1283 = vmatprep.subr.mxu0 0.0
        %1284 = vmatpush2.msra.mxu0 0.0
        %1285 = vmatprep.subr.mxu0 0.0
        %1286 = vmatpush2.msra.mxu0 0.0
        %1287 = vmatprep.subr.mxu0 0.0
        %1288 = vmatpush2.msra.mxu0 0.0
        %1289 = vmatprep.subr.mxu0 0.0
        %1290 = vmatpush2.msra.mxu0 0.0
        %1291 = vmatprep.subr.mxu0 0.0
        %1292 = vmatpush2.msra.mxu0 0.0
        %1293 = vmatprep.subr.mxu0 0.0
        %1294 = vmatpush2.msra.mxu0 0.0
        %1295 = vmatprep.subr.mxu0 0.0
        %1296 = vmatpush2.msra.mxu0 0.0
        %1297 = vmatprep.subr.mxu0 0.0
        %1298 = vmatpush2.msra.mxu0 0.0
        %1299 = vmatprep.subr.mxu0 0.0
        %1300 = vmatpush2.msra.mxu0 0.0
        %1301 = vmatprep.subr.mxu0 0.0
        %1302 = vmatpush2.msra.mxu0 0.0
        %1303 = vmatprep.subr.mxu0 0.0
        %1304 = vmatpush2.msra.mxu0 0.0
        %1305 = vmatprep.subr.mxu0 0.0
        %1306 = vmatpush2.msra.mxu0 0.0
        %1307 = vmatprep.subr.mxu0 0.0
        %1308 = vmatpush2.msra.mxu0 0.0
        %1309 = vmatprep.mubr.f32.mxu0 0.0
        %1310 = vmatmul.mubr.f32.gmra.mxu0 %v1243
        %v1311 = vpop.f32.mrf.mxu0
        %v1312 = vadd.f32 0.0, %v1311
        %v1313 = vpop.f32.mrf.mxu0
        %1314 = vdwg.mxu0
        %v1315 = vmul.f32 %v963, 0.0625
        %v1316 = vsub.f32 %v1312, %v1315
        %v1317 = vadd.f32 %v1316, %v1159
        %v1318 = vmul.f32 %v1317, 0.05
        %v1319 = vand.u32 2147483647, %v1317
        %v1320 = vadd.f32 %v1319, 1e-08
        %v1321 = vrcp.pop %v1320
        %v1322 = vmul.f32 %v1318, %v1321
        %v1323 = vsub.f32 %v535, %v1322
        %1324 = vst.msk [vmem:[%s525] sm:$0xff] %vm540, %v1128
        %1326 = vrot.lane.b32.xlu0 %v1323, 16
        %v1327 = vpop.permute.xlu0 %1326
        %vm1329 = vcmask 261248
        %1330 = vst.msk [vmem:[%s525] sm:$0xff] %vm1329, %v1327
        %vm1331 = vcmask 269568
        %1332 = vst.msk [vmem:[%s525] sm:$0xff] %vm1331, %v1154
        %s1333 = sand.u32 %s384, 1
        %s1334 = scalar_lea.sflag [#allocation3], %s1333
        %s1335 = sand.u32 %s384, 1
        %s1336 = smul.addr %s1335, 8
        %s1337 = scalar_lea.vmem [#allocation2], %s1336
        // Predicated region
        $region85: #{tpu_custom_call.1} parent=83 // pred_check
          %p1338 = pneg %p394
        $region86: #{tpu_custom_call.1} parent=83 // pred_check_branch
          %1340 = sbr.rel (%p1338) target = $region88
        $region87: #{tpu_custom_call.1} parent=83 // pred_region
          %s1342 = ssub.s32 128, 128
          %1343 = vsyncadd %s1334, %s1342
          %s1344 = smul.addr %s30, 128
          %s1345 = scalar_lea.hbm %s16, %s1344
          %s1347 = sshll.u32 %s1337, 4
          %s1348 = int_to_ptr.vmem [resolvable:$true] %s1347
          %1350 = dma.vmem_to_hbm [thread:$0]  %s1348, 128, %s1345, %s1334
        $region88: #{tpu_custom_call.1} parent=83 // pred_fallthru
          _
      $region84: #{tpu_custom_call.1} parent=5 // pred_fallthru
        _
      %p1351 = scmp.le.s32.totalorder 2, %s25
      // Predicated region
      $region89: #{tpu_custom_call.1} parent=5 // pred_check
        %p1352 = pneg %p1351
      $region90: #{tpu_custom_call.1} parent=5 // pred_check_branch
        %1354 = sbr.rel (%p1352) target = $region92
      $region91: #{tpu_custom_call.1} parent=5 // pred_region
        %s1355 = ssub.s32 %s25, 2
        // Predicated region
        $region93: #{tpu_custom_call.1} parent=91 // pred_check
          %p1356 = pneg %p400
        $region94: #{tpu_custom_call.1} parent=91 // pred_check_branch
          %1358 = sbr.rel (%p1356) target = $region96
        $region95: #{tpu_custom_call.1} parent=91 // pred_region
          %s1359 = sand.u32 %s385, 1
          %s1360 = scalar_lea.sflag [#allocation3], %s1359
          %s1361 = sand.u32 %s385, 1
          %s1362 = smul.addr %s1361, 8
          %s1363 = scalar_lea.vmem [#allocation2], %s1362
          %1364 = dma.done %s1360, 128
        $region96: #{tpu_custom_call.1} parent=91 // pred_fallthru
          _
      $region92: #{tpu_custom_call.1} parent=5 // pred_fallthru
        _
    $region6: #{tpu_custom_call.1} parent=1 // loop_footer
      %s29 = sadd.s32 1, %s25
    $region7: #{tpu_custom_call.1} parent=1 // loop_footer_branch
      %24 = sbr.rel target = $region3
    $region8: #{tpu_custom_call.1} parent=1 // loop_exit
      _
    %1365 = vsyncpa [#allocation3], 1
    %s1366 = scalar_lea.sflag [#allocation3], 1
    %1367 = vsyncpa %s1366, 1

</llo_original>
